<compile_context>
chip_gen: v5e
topology: v5e:2x2
jax: 0.10.0
libtpu: 0.0.40
codegen_flags: <defaults>
</compile_context>

<pallas_src>
import functools

import jax
import jax.numpy as jnp
import numpy as np
from jax.experimental import pallas as pl
from jax.experimental.pallas import tpu as pltpu

nChannel = 8
nc = 1

_LEAKY_SLOPE = 0.2
_BN_EPS = 1e-5
_KSIZE = 4
_INPUT_HW = 32  # implied by the final 4x4/s1/p0 conv producing a 1x1 output


# ---------------------------------------------------------------------------
# Trace-time constant builders (numpy / tiny jnp ops on the weights).
# Nothing here runs inside the kernel.
# ---------------------------------------------------------------------------
def _row_selectors(ho, hi, stride, pad):
    """R[ki, oh, h] = 1 iff h == stride*oh + ki - pad (zero rows = H padding)."""
    r = np.zeros((_KSIZE, ho, hi), np.float32)
    for ki in range(_KSIZE):
        for oh in range(ho):
            h = stride * oh + ki - pad
            if 0 <= h < hi:
                r[ki, oh, h] = 1.0
    return jnp.asarray(r)


def _band_matrices(w_oihw, wi, wo, stride, pad):
    """Per-ki banded weight matrices M[ki] : (wi*cin, wo*cout).

    With activations laid out X[h, w*Cin + ci], the tap-ki contribution of the
    conv is (R_ki @ X) @ M[ki]; the kj loop, the Cin contraction and the W
    zero-padding are all folded into the band structure of M[ki]."""
    cout, cin, k, _ = w_oihw.shape
    s = np.zeros((wi, k, wo), np.float32)
    for ow in range(wo):
        for kj in range(k):
            w_idx = stride * ow + kj - pad
            if 0 <= w_idx < wi:
                s[w_idx, kj, ow] = 1.0
    s = jnp.asarray(s)
    mats = []
    for ki in range(k):
        w_k = w_oihw[:, :, ki, :]                      # (cout, cin, k)
        t = jnp.einsum("xjy,ocj->xcyo", s, w_k)        # (wi, cin, wo, cout)
        mats.append(t.reshape(wi * cin, wo * cout))
    return jnp.stack(mats, axis=0)                     # (k, wi*cin, wo*cout)


def _channel_pool_matrix(wo, c):
    """P[(ow,co),(ow',co')] = 1 iff co == co'.  row_sums @ P turns per-(ow,co)
    sums into per-channel sums broadcast back across the ow lane groups, so
    BatchNorm stats stay in the lane-dense (h, w*c) layout (one tiny matmul,
    no lane-splitting reshapes)."""
    idx = np.arange(wo * c)
    return jnp.asarray((idx[:, None] % c == idx[None, :] % c).astype(np.float32))


def _leaky(y):
    return jnp.where(y >= 0.0, y, _LEAKY_SLOPE * y)


# ---------------------------------------------------------------------------
# The single fused kernel
# ---------------------------------------------------------------------------
def _discriminator_kernel(x_ref, r1_ref, m1_ref,
                          r2_ref, m2_ref, g2_ref, b2_ref, p2_ref,
                          r3_ref, m3_ref, g3_ref, b3_ref, p3_ref,
                          r4_ref, m4_ref, out_ref):
    n_img = out_ref.shape[0]
    mm = functools.partial(jnp.dot, preferred_element_type=jnp.float32)

    def conv_layer(x_all, r_ref, m_ref):
        # x_all: (n_img*Hi, Wi*Cin), rows ordered (n, h), lanes (w, cin).
        ho, hi = r_ref.shape[1], r_ref.shape[2]
        lanes_out = m_ref.shape[2]
        acc = jnp.zeros((n_img * ho, lanes_out), jnp.float32)
        for ki in range(_KSIZE):                       # static unroll, 4 taps
            r_k = r_ref[ki]                            # (ho, hi) constant 0/1
            sel = jnp.concatenate(
                [mm(r_k, x_all[n * hi:(n + 1) * hi, :]) for n in range(n_img)],
                axis=0)                                # (n_img*ho, Wi*Cin)
            acc = acc + mm(sel, m_ref[ki])             # batched main matmul
        return acc                                     # rows (n, oh), lanes (ow, cout)

    def bn_leaky(y, gamma_t, beta_t, p_mat, count):
        # Training-mode BatchNorm (batch stats, biased variance) + LeakyReLU,
        # computed directly in the lane-dense layout on the f32 accumulator.
        s1 = jnp.sum(y, axis=0, keepdims=True)         # (1, Wo*C)
        s2 = jnp.sum(y * y, axis=0, keepdims=True)
        inv = 1.0 / count
        mean = mm(s1, p_mat) * inv                     # per-channel, lane-broadcast
        ex2 = mm(s2, p_mat) * inv
        var = ex2 - mean * mean
        scale = jax.lax.rsqrt(var + _BN_EPS) * gamma_t
        yhat = (y - mean) * scale + beta_t
        return _leaky(yhat)

    x0 = x_ref[...]                                    # (N*32, 32)  raw images

    # conv1 + LeakyReLU                                -> (N*16, 128)
    x1 = _leaky(conv_layer(x0, r1_ref, m1_ref))
    # conv2 + BatchNorm + LeakyReLU                    -> (N*8, 128)
    x2 = bn_leaky(conv_layer(x1, r2_ref, m2_ref),
                  g2_ref[...], b2_ref[...], p2_ref[...], n_img * 8 * 8)
    # conv3 + BatchNorm + LeakyReLU                    -> (N*4, 128)
    x3 = bn_leaky(conv_layer(x2, r3_ref, m3_ref),
                  g3_ref[...], b3_ref[...], p3_ref[...], n_img * 4 * 4)
    # conv4 + Sigmoid (exact)                          -> (N, 1)
    logits = conv_layer(x3, r4_ref, m4_ref)
    out_ref[...] = 1.0 / (1.0 + jnp.exp(-logits))


# ---------------------------------------------------------------------------
# Wrapper: free input reshape + trace-time constant construction + one call.
# ---------------------------------------------------------------------------
def discriminator_forward(x_nchw, params):
    n, c, h, w = x_nchw.shape
    assert c == nc and h == _INPUT_HW and w == _INPUT_HW, (n, c, h, w)
    ndf = params["w1"].shape[0]

    # Raw images, rows ordered (n, h), lanes = w (Cin = 1).  Free reshape.
    x2d = x_nchw.reshape(n * h, w).astype(jnp.float32)

    r1 = _row_selectors(16, 32, 2, 1)
    m1 = _band_matrices(params["w1"], 32, 16, 2, 1)    # (4, 32, 128)
    r2 = _row_selectors(8, 16, 2, 1)
    m2 = _band_matrices(params["w2"], 16, 8, 2, 1)     # (4, 128, 128)
    r3 = _row_selectors(4, 8, 2, 1)
    m3 = _band_matrices(params["w3"], 8, 4, 2, 1)      # (4, 128, 128)
    r4 = _row_selectors(1, 4, 1, 0)
    m4 = _band_matrices(params["w4"], 4, 1, 1, 0)      # (4, 128, 1)

    # gamma/beta tiled to the lane-dense (ow, co) layout.
    g2 = jnp.tile(params["g2"], 8).reshape(1, -1)      # (1, 128)
    b2 = jnp.tile(params["b2"], 8).reshape(1, -1)
    g3 = jnp.tile(params["g3"], 4).reshape(1, -1)      # (1, 128)
    b3 = jnp.tile(params["b3"], 4).reshape(1, -1)
    p2 = _channel_pool_matrix(8, 2 * ndf)              # (128, 128)
    p3 = _channel_pool_matrix(4, 4 * ndf)              # (128, 128)

    vmem = pl.BlockSpec(memory_space=pltpu.MemorySpace.VMEM)
    out = pl.pallas_call(
        _discriminator_kernel,
        out_shape=jax.ShapeDtypeStruct((n, 1), jnp.float32),
        in_specs=[vmem] * 15,
        out_specs=vmem,
    )(x2d, r1, m1, r2, m2, g2, b2, p2, r3, m3, g3, b3, p3, r4, m4)

    # output.view(-1, 1).squeeze(1)
    return out.reshape(-1)


# ---------------------------------------------------------------------------
# Pure-JAX reference (for correctness check) + parameter construction
# ---------------------------------------------------------------------------
def _reference_forward(x, params):
    def conv(y, w, stride, pad):
        return jax.lax.conv_general_dilated(
            y, w, window_strides=(stride, stride),
            padding=[(pad, pad), (pad, pad)],
            dimension_numbers=("NCHW", "OIHW", "NCHW"))

    def bn(y, g, b):
        mean = jnp.mean(y, axis=(0, 2, 3), keepdims=True)
        var = jnp.mean((y - mean) ** 2, axis=(0, 2, 3), keepdims=True)
        return ((y - mean) * jax.lax.rsqrt(var + _BN_EPS)
                * g.reshape(1, -1, 1, 1) + b.reshape(1, -1, 1, 1))

    y = _leaky(conv(x, params["w1"], 2, 1))
    y = _leaky(bn(conv(y, params["w2"], 2, 1), params["g2"], params["b2"]))
    y = _leaky(bn(conv(y, params["w3"], 2, 1), params["g3"], params["b3"]))
    y = conv(y, params["w4"], 1, 0)
    return jax.nn.sigmoid(y).reshape(-1)


def make_params(key, ndf=nChannel):
    k1, k2, k3, k4, k5, k6 = jax.random.split(key, 6)
    std = 0.02
    return {
        "w1": jax.random.normal(k1, (ndf, nc, 4, 4), jnp.float32) * std,
        "w2": jax.random.normal(k2, (ndf * 2, ndf, 4, 4), jnp.float32) * std,
        "g2": 1.0 + 0.1 * jax.random.normal(k5, (ndf * 2,), jnp.float32),
        "b2": 0.1 * jax.random.normal(k5, (ndf * 2,), jnp.float32),
        "w3": jax.random.normal(k3, (ndf * 4, ndf * 2, 4, 4), jnp.float32) * std,
        "g3": 1.0 + 0.1 * jax.random.normal(k6, (ndf * 4,), jnp.float32),
        "b3": 0.1 * jax.random.normal(k6, (ndf * 4,), jnp.float32),
        "w4": jax.random.normal(k4, (1, ndf * 4, 4, 4), jnp.float32) * std,
    }


if __name__ == "__main__":
    key = jax.random.PRNGKey(0)
    kp, kx = jax.random.split(key)
    params = make_params(kp)

    # 32x32 single-channel input so the final 4x4/s1/p0 conv yields 1x1,
    # exactly as the DCGAN discriminator expects.
    x = jax.random.normal(kx, (2, nc, 32, 32), jnp.float32)

    out = jax.block_until_ready(jax.jit(discriminator_forward)(x, params))
    ref = jax.block_until_ready(jax.jit(_reference_forward)(x, params))

    assert out.shape == (2,), out.shape
    assert bool(jnp.all(jnp.isfinite(out)))
    assert bool(jnp.all((out >= 0.0) & (out <= 1.0)))      # sigmoid range
    err = float(jnp.max(jnp.abs(out - ref)))
    assert err < 5e-2, f"max abs diff vs reference: {err}"
    print("KERNEL_OK")
</pallas_src>

<mosaic_0001>
module attributes {stable_mosaic.version = 11 : i64} {
  func.func @_discriminator_kernel(%arg0: memref<64x32xf32, #tpu.memory_space<vmem>>, %arg1: memref<4x16x32xf32, #tpu.memory_space<vmem>>, %arg2: memref<4x32x128xf32, #tpu.memory_space<vmem>>, %arg3: memref<4x8x16xf32, #tpu.memory_space<vmem>>, %arg4: memref<4x128x128xf32, #tpu.memory_space<vmem>>, %arg5: memref<1x128xf32, #tpu.memory_space<vmem>>, %arg6: memref<1x128xf32, #tpu.memory_space<vmem>>, %arg7: memref<128x128xf32, #tpu.memory_space<vmem>>, %arg8: memref<4x4x8xf32, #tpu.memory_space<vmem>>, %arg9: memref<4x128x128xf32, #tpu.memory_space<vmem>>, %arg10: memref<1x128xf32, #tpu.memory_space<vmem>>, %arg11: memref<1x128xf32, #tpu.memory_space<vmem>>, %arg12: memref<128x128xf32, #tpu.memory_space<vmem>>, %arg13: memref<4x1x4xf32, #tpu.memory_space<vmem>>, %arg14: memref<4x128x1xf32, #tpu.memory_space<vmem>>, %arg15: memref<2x1xf32, #tpu.memory_space<vmem>>) attributes {dimension_semantics = [], scalar_prefetch = 0 : i64, scratch_operands = 0 : i64, tpu.core_type = #tpu.core_type<tc>} {
    %c0 = arith.constant 0 : index
    %c0_0 = arith.constant 0 : index
    %0 = vector.load %arg0[%c0, %c0_0] : memref<64x32xf32, #tpu.memory_space<vmem>>, vector<64x32xf32>
    %cst = arith.constant 0.000000e+00 : f32
    %1 = vector.broadcast %cst : f32 to vector<32x128xf32>
    %c0_1 = arith.constant 0 : index
    %c0_2 = arith.constant 0 : index
    %c0_3 = arith.constant 0 : index
    %2 = vector.load %arg1[%c0_1, %c0_2, %c0_3] : memref<4x16x32xf32, #tpu.memory_space<vmem>>, vector<1x16x32xf32>
    %3 = vector.shape_cast %2 : vector<1x16x32xf32> to vector<16x32xf32>
    %4 = vector.extract_strided_slice %0 {offsets = [0, 0], sizes = [32, 32], strides = [1, 1]} : vector<64x32xf32> to vector<32x32xf32>
    %cst_4 = arith.constant dense<0.000000e+00> : vector<16x32xf32>
    %5 = tpu.matmul %3, %4, %cst_4 {dimension_numbers = #tpu.dot_dimension_numbers<[1], [0], [0], [1], [0, 0, 1, 1], [], []>} : vector<16x32xf32>, vector<32x32xf32>, vector<16x32xf32> -> vector<16x32xf32>
    %6 = vector.extract_strided_slice %0 {offsets = [32, 0], sizes = [32, 32], strides = [1, 1]} : vector<64x32xf32> to vector<32x32xf32>
    %cst_5 = arith.constant dense<0.000000e+00> : vector<16x32xf32>
    %7 = tpu.matmul %3, %6, %cst_5 {dimension_numbers = #tpu.dot_dimension_numbers<[1], [0], [0], [1], [0, 0, 1, 1], [], []>} : vector<16x32xf32>, vector<32x32xf32>, vector<16x32xf32> -> vector<16x32xf32>
    %8 = tpu.concatenate %5, %7 in 0 : vector<16x32xf32>, vector<16x32xf32> -> vector<32x32xf32>
    %c0_6 = arith.constant 0 : index
    %c0_7 = arith.constant 0 : index
    %c0_8 = arith.constant 0 : index
    %9 = vector.load %arg2[%c0_6, %c0_7, %c0_8] : memref<4x32x128xf32, #tpu.memory_space<vmem>>, vector<1x32x128xf32>
    %10 = vector.shape_cast %9 : vector<1x32x128xf32> to vector<32x128xf32>
    %cst_9 = arith.constant dense<0.000000e+00> : vector<32x128xf32>
    %11 = tpu.matmul %8, %10, %cst_9 {dimension_numbers = #tpu.dot_dimension_numbers<[1], [0], [0], [1], [0, 0, 1, 1], [], []>} : vector<32x32xf32>, vector<32x128xf32>, vector<32x128xf32> -> vector<32x128xf32>
    %12 = arith.addf %1, %11 : vector<32x128xf32>
    %c1 = arith.constant 1 : index
    %c0_10 = arith.constant 0 : index
    %c0_11 = arith.constant 0 : index
    %13 = vector.load %arg1[%c1, %c0_10, %c0_11] : memref<4x16x32xf32, #tpu.memory_space<vmem>>, vector<1x16x32xf32>
    %14 = vector.shape_cast %13 : vector<1x16x32xf32> to vector<16x32xf32>
    %15 = vector.extract_strided_slice %0 {offsets = [0, 0], sizes = [32, 32], strides = [1, 1]} : vector<64x32xf32> to vector<32x32xf32>
    %cst_12 = arith.constant dense<0.000000e+00> : vector<16x32xf32>
    %16 = tpu.matmul %14, %15, %cst_12 {dimension_numbers = #tpu.dot_dimension_numbers<[1], [0], [0], [1], [0, 0, 1, 1], [], []>} : vector<16x32xf32>, vector<32x32xf32>, vector<16x32xf32> -> vector<16x32xf32>
    %17 = vector.extract_strided_slice %0 {offsets = [32, 0], sizes = [32, 32], strides = [1, 1]} : vector<64x32xf32> to vector<32x32xf32>
    %cst_13 = arith.constant dense<0.000000e+00> : vector<16x32xf32>
    %18 = tpu.matmul %14, %17, %cst_13 {dimension_numbers = #tpu.dot_dimension_numbers<[1], [0], [0], [1], [0, 0, 1, 1], [], []>} : vector<16x32xf32>, vector<32x32xf32>, vector<16x32xf32> -> vector<16x32xf32>
    %19 = tpu.concatenate %16, %18 in 0 : vector<16x32xf32>, vector<16x32xf32> -> vector<32x32xf32>
    %c1_14 = arith.constant 1 : index
    %c0_15 = arith.constant 0 : index
    %c0_16 = arith.constant 0 : index
    %20 = vector.load %arg2[%c1_14, %c0_15, %c0_16] : memref<4x32x128xf32, #tpu.memory_space<vmem>>, vector<1x32x128xf32>
    %21 = vector.shape_cast %20 : vector<1x32x128xf32> to vector<32x128xf32>
    %cst_17 = arith.constant dense<0.000000e+00> : vector<32x128xf32>
    %22 = tpu.matmul %19, %21, %cst_17 {dimension_numbers = #tpu.dot_dimension_numbers<[1], [0], [0], [1], [0, 0, 1, 1], [], []>} : vector<32x32xf32>, vector<32x128xf32>, vector<32x128xf32> -> vector<32x128xf32>
    %23 = arith.addf %12, %22 : vector<32x128xf32>
    %c2 = arith.constant 2 : index
    %c0_18 = arith.constant 0 : index
    %c0_19 = arith.constant 0 : index
    %24 = vector.load %arg1[%c2, %c0_18, %c0_19] : memref<4x16x32xf32, #tpu.memory_space<vmem>>, vector<1x16x32xf32>
    %25 = vector.shape_cast %24 : vector<1x16x32xf32> to vector<16x32xf32>
    %26 = vector.extract_strided_slice %0 {offsets = [0, 0], sizes = [32, 32], strides = [1, 1]} : vector<64x32xf32> to vector<32x32xf32>
    %cst_20 = arith.constant dense<0.000000e+00> : vector<16x32xf32>
    %27 = tpu.matmul %25, %26, %cst_20 {dimension_numbers = #tpu.dot_dimension_numbers<[1], [0], [0], [1], [0, 0, 1, 1], [], []>} : vector<16x32xf32>, vector<32x32xf32>, vector<16x32xf32> -> vector<16x32xf32>
    %28 = vector.extract_strided_slice %0 {offsets = [32, 0], sizes = [32, 32], strides = [1, 1]} : vector<64x32xf32> to vector<32x32xf32>
    %cst_21 = arith.constant dense<0.000000e+00> : vector<16x32xf32>
    %29 = tpu.matmul %25, %28, %cst_21 {dimension_numbers = #tpu.dot_dimension_numbers<[1], [0], [0], [1], [0, 0, 1, 1], [], []>} : vector<16x32xf32>, vector<32x32xf32>, vector<16x32xf32> -> vector<16x32xf32>
    %30 = tpu.concatenate %27, %29 in 0 : vector<16x32xf32>, vector<16x32xf32> -> vector<32x32xf32>
    %c2_22 = arith.constant 2 : index
    %c0_23 = arith.constant 0 : index
    %c0_24 = arith.constant 0 : index
    %31 = vector.load %arg2[%c2_22, %c0_23, %c0_24] : memref<4x32x128xf32, #tpu.memory_space<vmem>>, vector<1x32x128xf32>
    %32 = vector.shape_cast %31 : vector<1x32x128xf32> to vector<32x128xf32>
    %cst_25 = arith.constant dense<0.000000e+00> : vector<32x128xf32>
    %33 = tpu.matmul %30, %32, %cst_25 {dimension_numbers = #tpu.dot_dimension_numbers<[1], [0], [0], [1], [0, 0, 1, 1], [], []>} : vector<32x32xf32>, vector<32x128xf32>, vector<32x128xf32> -> vector<32x128xf32>
    %34 = arith.addf %23, %33 : vector<32x128xf32>
    %c3 = arith.constant 3 : index
    %c0_26 = arith.constant 0 : index
    %c0_27 = arith.constant 0 : index
    %35 = vector.load %arg1[%c3, %c0_26, %c0_27] : memref<4x16x32xf32, #tpu.memory_space<vmem>>, vector<1x16x32xf32>
    %36 = vector.shape_cast %35 : vector<1x16x32xf32> to vector<16x32xf32>
    %37 = vector.extract_strided_slice %0 {offsets = [0, 0], sizes = [32, 32], strides = [1, 1]} : vector<64x32xf32> to vector<32x32xf32>
    %cst_28 = arith.constant dense<0.000000e+00> : vector<16x32xf32>
    %38 = tpu.matmul %36, %37, %cst_28 {dimension_numbers = #tpu.dot_dimension_numbers<[1], [0], [0], [1], [0, 0, 1, 1], [], []>} : vector<16x32xf32>, vector<32x32xf32>, vector<16x32xf32> -> vector<16x32xf32>
    %39 = vector.extract_strided_slice %0 {offsets = [32, 0], sizes = [32, 32], strides = [1, 1]} : vector<64x32xf32> to vector<32x32xf32>
    %cst_29 = arith.constant dense<0.000000e+00> : vector<16x32xf32>
    %40 = tpu.matmul %36, %39, %cst_29 {dimension_numbers = #tpu.dot_dimension_numbers<[1], [0], [0], [1], [0, 0, 1, 1], [], []>} : vector<16x32xf32>, vector<32x32xf32>, vector<16x32xf32> -> vector<16x32xf32>
    %41 = tpu.concatenate %38, %40 in 0 : vector<16x32xf32>, vector<16x32xf32> -> vector<32x32xf32>
    %c3_30 = arith.constant 3 : index
    %c0_31 = arith.constant 0 : index
    %c0_32 = arith.constant 0 : index
    %42 = vector.load %arg2[%c3_30, %c0_31, %c0_32] : memref<4x32x128xf32, #tpu.memory_space<vmem>>, vector<1x32x128xf32>
    %43 = vector.shape_cast %42 : vector<1x32x128xf32> to vector<32x128xf32>
    %cst_33 = arith.constant dense<0.000000e+00> : vector<32x128xf32>
    %44 = tpu.matmul %41, %43, %cst_33 {dimension_numbers = #tpu.dot_dimension_numbers<[1], [0], [0], [1], [0, 0, 1, 1], [], []>} : vector<32x32xf32>, vector<32x128xf32>, vector<32x128xf32> -> vector<32x128xf32>
    %45 = arith.addf %34, %44 : vector<32x128xf32>
    %cst_34 = arith.constant 0.000000e+00 : f32
    %46 = vector.broadcast %cst_34 : f32 to vector<32x128xf32>
    %47 = arith.cmpf oge, %45, %46 : vector<32x128xf32>
    %cst_35 = arith.constant 2.000000e-01 : f32
    %48 = vector.broadcast %cst_35 : f32 to vector<32x128xf32>
    %49 = arith.mulf %48, %45 : vector<32x128xf32>
    %50 = arith.select %47, %45, %49 : vector<32x128xi1>, vector<32x128xf32>
    %cst_36 = arith.constant 0.000000e+00 : f32
    %51 = vector.broadcast %cst_36 : f32 to vector<16x128xf32>
    %c0_37 = arith.constant 0 : index
    %c0_38 = arith.constant 0 : index
    %c0_39 = arith.constant 0 : index
    %52 = vector.load %arg3[%c0_37, %c0_38, %c0_39] : memref<4x8x16xf32, #tpu.memory_space<vmem>>, vector<1x8x16xf32>
    %53 = vector.shape_cast %52 : vector<1x8x16xf32> to vector<8x16xf32>
    %54 = vector.extract_strided_slice %50 {offsets = [0, 0], sizes = [16, 128], strides = [1, 1]} : vector<32x128xf32> to vector<16x128xf32>
    %cst_40 = arith.constant dense<0.000000e+00> : vector<8x128xf32>
    %55 = tpu.matmul %53, %54, %cst_40 {dimension_numbers = #tpu.dot_dimension_numbers<[1], [0], [0], [1], [0, 0, 1, 1], [], []>} : vector<8x16xf32>, vector<16x128xf32>, vector<8x128xf32> -> vector<8x128xf32>
    %56 = vector.extract_strided_slice %50 {offsets = [16, 0], sizes = [16, 128], strides = [1, 1]} : vector<32x128xf32> to vector<16x128xf32>
    %cst_41 = arith.constant dense<0.000000e+00> : vector<8x128xf32>
    %57 = tpu.matmul %53, %56, %cst_41 {dimension_numbers = #tpu.dot_dimension_numbers<[1], [0], [0], [1], [0, 0, 1, 1], [], []>} : vector<8x16xf32>, vector<16x128xf32>, vector<8x128xf32> -> vector<8x128xf32>
    %58 = tpu.concatenate %55, %57 in 0 : vector<8x128xf32>, vector<8x128xf32> -> vector<16x128xf32>
    %c0_42 = arith.constant 0 : index
    %c0_43 = arith.constant 0 : index
    %c0_44 = arith.constant 0 : index
    %59 = vector.load %arg4[%c0_42, %c0_43, %c0_44] : memref<4x128x128xf32, #tpu.memory_space<vmem>>, vector<1x128x128xf32>
    %60 = vector.shape_cast %59 : vector<1x128x128xf32> to vector<128x128xf32>
    %cst_45 = arith.constant dense<0.000000e+00> : vector<16x128xf32>
    %61 = tpu.matmul %58, %60, %cst_45 {dimension_numbers = #tpu.dot_dimension_numbers<[1], [0], [0], [1], [0, 0, 1, 1], [], []>} : vector<16x128xf32>, vector<128x128xf32>, vector<16x128xf32> -> vector<16x128xf32>
    %62 = arith.addf %51, %61 : vector<16x128xf32>
    %c1_46 = arith.constant 1 : index
    %c0_47 = arith.constant 0 : index
    %c0_48 = arith.constant 0 : index
    %63 = vector.load %arg3[%c1_46, %c0_47, %c0_48] : memref<4x8x16xf32, #tpu.memory_space<vmem>>, vector<1x8x16xf32>
    %64 = vector.shape_cast %63 : vector<1x8x16xf32> to vector<8x16xf32>
    %65 = vector.extract_strided_slice %50 {offsets = [0, 0], sizes = [16, 128], strides = [1, 1]} : vector<32x128xf32> to vector<16x128xf32>
    %cst_49 = arith.constant dense<0.000000e+00> : vector<8x128xf32>
    %66 = tpu.matmul %64, %65, %cst_49 {dimension_numbers = #tpu.dot_dimension_numbers<[1], [0], [0], [1], [0, 0, 1, 1], [], []>} : vector<8x16xf32>, vector<16x128xf32>, vector<8x128xf32> -> vector<8x128xf32>
    %67 = vector.extract_strided_slice %50 {offsets = [16, 0], sizes = [16, 128], strides = [1, 1]} : vector<32x128xf32> to vector<16x128xf32>
    %cst_50 = arith.constant dense<0.000000e+00> : vector<8x128xf32>
    %68 = tpu.matmul %64, %67, %cst_50 {dimension_numbers = #tpu.dot_dimension_numbers<[1], [0], [0], [1], [0, 0, 1, 1], [], []>} : vector<8x16xf32>, vector<16x128xf32>, vector<8x128xf32> -> vector<8x128xf32>
    %69 = tpu.concatenate %66, %68 in 0 : vector<8x128xf32>, vector<8x128xf32> -> vector<16x128xf32>
    %c1_51 = arith.constant 1 : index
    %c0_52 = arith.constant 0 : index
    %c0_53 = arith.constant 0 : index
    %70 = vector.load %arg4[%c1_51, %c0_52, %c0_53] : memref<4x128x128xf32, #tpu.memory_space<vmem>>, vector<1x128x128xf32>
    %71 = vector.shape_cast %70 : vector<1x128x128xf32> to vector<128x128xf32>
    %cst_54 = arith.constant dense<0.000000e+00> : vector<16x128xf32>
    %72 = tpu.matmul %69, %71, %cst_54 {dimension_numbers = #tpu.dot_dimension_numbers<[1], [0], [0], [1], [0, 0, 1, 1], [], []>} : vector<16x128xf32>, vector<128x128xf32>, vector<16x128xf32> -> vector<16x128xf32>
    %73 = arith.addf %62, %72 : vector<16x128xf32>
    %c2_55 = arith.constant 2 : index
    %c0_56 = arith.constant 0 : index
    %c0_57 = arith.constant 0 : index
    %74 = vector.load %arg3[%c2_55, %c0_56, %c0_57] : memref<4x8x16xf32, #tpu.memory_space<vmem>>, vector<1x8x16xf32>
    %75 = vector.shape_cast %74 : vector<1x8x16xf32> to vector<8x16xf32>
    %76 = vector.extract_strided_slice %50 {offsets = [0, 0], sizes = [16, 128], strides = [1, 1]} : vector<32x128xf32> to vector<16x128xf32>
    %cst_58 = arith.constant dense<0.000000e+00> : vector<8x128xf32>
    %77 = tpu.matmul %75, %76, %cst_58 {dimension_numbers = #tpu.dot_dimension_numbers<[1], [0], [0], [1], [0, 0, 1, 1], [], []>} : vector<8x16xf32>, vector<16x128xf32>, vector<8x128xf32> -> vector<8x128xf32>
    %78 = vector.extract_strided_slice %50 {offsets = [16, 0], sizes = [16, 128], strides = [1, 1]} : vector<32x128xf32> to vector<16x128xf32>
    %cst_59 = arith.constant dense<0.000000e+00> : vector<8x128xf32>
    %79 = tpu.matmul %75, %78, %cst_59 {dimension_numbers = #tpu.dot_dimension_numbers<[1], [0], [0], [1], [0, 0, 1, 1], [], []>} : vector<8x16xf32>, vector<16x128xf32>, vector<8x128xf32> -> vector<8x128xf32>
    %80 = tpu.concatenate %77, %79 in 0 : vector<8x128xf32>, vector<8x128xf32> -> vector<16x128xf32>
    %c2_60 = arith.constant 2 : index
    %c0_61 = arith.constant 0 : index
    %c0_62 = arith.constant 0 : index
    %81 = vector.load %arg4[%c2_60, %c0_61, %c0_62] : memref<4x128x128xf32, #tpu.memory_space<vmem>>, vector<1x128x128xf32>
    %82 = vector.shape_cast %81 : vector<1x128x128xf32> to vector<128x128xf32>
    %cst_63 = arith.constant dense<0.000000e+00> : vector<16x128xf32>
    %83 = tpu.matmul %80, %82, %cst_63 {dimension_numbers = #tpu.dot_dimension_numbers<[1], [0], [0], [1], [0, 0, 1, 1], [], []>} : vector<16x128xf32>, vector<128x128xf32>, vector<16x128xf32> -> vector<16x128xf32>
    %84 = arith.addf %73, %83 : vector<16x128xf32>
    %c3_64 = arith.constant 3 : index
    %c0_65 = arith.constant 0 : index
    %c0_66 = arith.constant 0 : index
    %85 = vector.load %arg3[%c3_64, %c0_65, %c0_66] : memref<4x8x16xf32, #tpu.memory_space<vmem>>, vector<1x8x16xf32>
    %86 = vector.shape_cast %85 : vector<1x8x16xf32> to vector<8x16xf32>
    %87 = vector.extract_strided_slice %50 {offsets = [0, 0], sizes = [16, 128], strides = [1, 1]} : vector<32x128xf32> to vector<16x128xf32>
    %cst_67 = arith.constant dense<0.000000e+00> : vector<8x128xf32>
    %88 = tpu.matmul %86, %87, %cst_67 {dimension_numbers = #tpu.dot_dimension_numbers<[1], [0], [0], [1], [0, 0, 1, 1], [], []>} : vector<8x16xf32>, vector<16x128xf32>, vector<8x128xf32> -> vector<8x128xf32>
    %89 = vector.extract_strided_slice %50 {offsets = [16, 0], sizes = [16, 128], strides = [1, 1]} : vector<32x128xf32> to vector<16x128xf32>
    %cst_68 = arith.constant dense<0.000000e+00> : vector<8x128xf32>
    %90 = tpu.matmul %86, %89, %cst_68 {dimension_numbers = #tpu.dot_dimension_numbers<[1], [0], [0], [1], [0, 0, 1, 1], [], []>} : vector<8x16xf32>, vector<16x128xf32>, vector<8x128xf32> -> vector<8x128xf32>
    %91 = tpu.concatenate %88, %90 in 0 : vector<8x128xf32>, vector<8x128xf32> -> vector<16x128xf32>
    %c3_69 = arith.constant 3 : index
    %c0_70 = arith.constant 0 : index
    %c0_71 = arith.constant 0 : index
    %92 = vector.load %arg4[%c3_69, %c0_70, %c0_71] : memref<4x128x128xf32, #tpu.memory_space<vmem>>, vector<1x128x128xf32>
    %93 = vector.shape_cast %92 : vector<1x128x128xf32> to vector<128x128xf32>
    %cst_72 = arith.constant dense<0.000000e+00> : vector<16x128xf32>
    %94 = tpu.matmul %91, %93, %cst_72 {dimension_numbers = #tpu.dot_dimension_numbers<[1], [0], [0], [1], [0, 0, 1, 1], [], []>} : vector<16x128xf32>, vector<128x128xf32>, vector<16x128xf32> -> vector<16x128xf32>
    %95 = arith.addf %84, %94 : vector<16x128xf32>
    %c0_73 = arith.constant 0 : index
    %c0_74 = arith.constant 0 : index
    %96 = vector.load %arg5[%c0_73, %c0_74] : memref<1x128xf32, #tpu.memory_space<vmem>>, vector<1x128xf32>
    %c0_75 = arith.constant 0 : index
    %c0_76 = arith.constant 0 : index
    %97 = vector.load %arg6[%c0_75, %c0_76] : memref<1x128xf32, #tpu.memory_space<vmem>>, vector<1x128xf32>
    %c0_77 = arith.constant 0 : index
    %c0_78 = arith.constant 0 : index
    %98 = vector.load %arg7[%c0_77, %c0_78] : memref<128x128xf32, #tpu.memory_space<vmem>>, vector<128x128xf32>
    %cst_79 = arith.constant dense<0.000000e+00> : vector<128xf32>
    %99 = vector.multi_reduction <add>, %95, %cst_79 [0] : vector<16x128xf32> to vector<128xf32>
    %100 = vector.shape_cast %99 : vector<128xf32> to vector<1x128xf32>
    %101 = arith.mulf %95, %95 : vector<16x128xf32>
    %cst_80 = arith.constant dense<0.000000e+00> : vector<128xf32>
    %102 = vector.multi_reduction <add>, %101, %cst_80 [0] : vector<16x128xf32> to vector<128xf32>
    %103 = vector.shape_cast %102 : vector<128xf32> to vector<1x128xf32>
    %cst_81 = arith.constant dense<0.000000e+00> : vector<1x128xf32>
    %104 = tpu.matmul %100, %98, %cst_81 {dimension_numbers = #tpu.dot_dimension_numbers<[1], [0], [0], [1], [0, 0, 1, 1], [], []>} : vector<1x128xf32>, vector<128x128xf32>, vector<1x128xf32> -> vector<1x128xf32>
    %cst_82 = arith.constant 7.812500e-03 : f32
    %105 = vector.broadcast %cst_82 : f32 to vector<1x128xf32>
    %106 = arith.mulf %104, %105 : vector<1x128xf32>
    %cst_83 = arith.constant dense<0.000000e+00> : vector<1x128xf32>
    %107 = tpu.matmul %103, %98, %cst_83 {dimension_numbers = #tpu.dot_dimension_numbers<[1], [0], [0], [1], [0, 0, 1, 1], [], []>} : vector<1x128xf32>, vector<128x128xf32>, vector<1x128xf32> -> vector<1x128xf32>
    %cst_84 = arith.constant 7.812500e-03 : f32
    %108 = vector.broadcast %cst_84 : f32 to vector<1x128xf32>
    %109 = arith.mulf %107, %108 : vector<1x128xf32>
    %110 = arith.mulf %106, %106 : vector<1x128xf32>
    %111 = arith.subf %109, %110 : vector<1x128xf32>
    %cst_85 = arith.constant 9.99999974E-6 : f32
    %112 = vector.broadcast %cst_85 : f32 to vector<1x128xf32>
    %113 = arith.addf %111, %112 : vector<1x128xf32>
    %114 = math.rsqrt %113 : vector<1x128xf32>
    %115 = arith.mulf %114, %96 : vector<1x128xf32>
    %116 = vector.broadcast %106 : vector<1x128xf32> to vector<16x128xf32>
    %117 = arith.subf %95, %116 : vector<16x128xf32>
    %118 = vector.broadcast %115 : vector<1x128xf32> to vector<16x128xf32>
    %119 = arith.mulf %117, %118 : vector<16x128xf32>
    %120 = vector.broadcast %97 : vector<1x128xf32> to vector<16x128xf32>
    %121 = arith.addf %119, %120 : vector<16x128xf32>
    %cst_86 = arith.constant 0.000000e+00 : f32
    %122 = vector.broadcast %cst_86 : f32 to vector<16x128xf32>
    %123 = arith.cmpf oge, %121, %122 : vector<16x128xf32>
    %cst_87 = arith.constant 2.000000e-01 : f32
    %124 = vector.broadcast %cst_87 : f32 to vector<16x128xf32>
    %125 = arith.mulf %124, %121 : vector<16x128xf32>
    %126 = arith.select %123, %121, %125 : vector<16x128xi1>, vector<16x128xf32>
    %cst_88 = arith.constant 0.000000e+00 : f32
    %127 = vector.broadcast %cst_88 : f32 to vector<8x128xf32>
    %c0_89 = arith.constant 0 : index
    %c0_90 = arith.constant 0 : index
    %c0_91 = arith.constant 0 : index
    %128 = vector.load %arg8[%c0_89, %c0_90, %c0_91] : memref<4x4x8xf32, #tpu.memory_space<vmem>>, vector<1x4x8xf32>
    %129 = vector.shape_cast %128 : vector<1x4x8xf32> to vector<4x8xf32>
    %130 = vector.extract_strided_slice %126 {offsets = [0, 0], sizes = [8, 128], strides = [1, 1]} : vector<16x128xf32> to vector<8x128xf32>
    %cst_92 = arith.constant dense<0.000000e+00> : vector<4x128xf32>
    %131 = tpu.matmul %129, %130, %cst_92 {dimension_numbers = #tpu.dot_dimension_numbers<[1], [0], [0], [1], [0, 0, 1, 1], [], []>} : vector<4x8xf32>, vector<8x128xf32>, vector<4x128xf32> -> vector<4x128xf32>
    %132 = vector.extract_strided_slice %126 {offsets = [8, 0], sizes = [8, 128], strides = [1, 1]} : vector<16x128xf32> to vector<8x128xf32>
    %cst_93 = arith.constant dense<0.000000e+00> : vector<4x128xf32>
    %133 = tpu.matmul %129, %132, %cst_93 {dimension_numbers = #tpu.dot_dimension_numbers<[1], [0], [0], [1], [0, 0, 1, 1], [], []>} : vector<4x8xf32>, vector<8x128xf32>, vector<4x128xf32> -> vector<4x128xf32>
    %134 = tpu.concatenate %131, %133 in 0 : vector<4x128xf32>, vector<4x128xf32> -> vector<8x128xf32>
    %c0_94 = arith.constant 0 : index
    %c0_95 = arith.constant 0 : index
    %c0_96 = arith.constant 0 : index
    %135 = vector.load %arg9[%c0_94, %c0_95, %c0_96] : memref<4x128x128xf32, #tpu.memory_space<vmem>>, vector<1x128x128xf32>
    %136 = vector.shape_cast %135 : vector<1x128x128xf32> to vector<128x128xf32>
    %cst_97 = arith.constant dense<0.000000e+00> : vector<8x128xf32>
    %137 = tpu.matmul %134, %136, %cst_97 {dimension_numbers = #tpu.dot_dimension_numbers<[1], [0], [0], [1], [0, 0, 1, 1], [], []>} : vector<8x128xf32>, vector<128x128xf32>, vector<8x128xf32> -> vector<8x128xf32>
    %138 = arith.addf %127, %137 : vector<8x128xf32>
    %c1_98 = arith.constant 1 : index
    %c0_99 = arith.constant 0 : index
    %c0_100 = arith.constant 0 : index
    %139 = vector.load %arg8[%c1_98, %c0_99, %c0_100] : memref<4x4x8xf32, #tpu.memory_space<vmem>>, vector<1x4x8xf32>
    %140 = vector.shape_cast %139 : vector<1x4x8xf32> to vector<4x8xf32>
    %141 = vector.extract_strided_slice %126 {offsets = [0, 0], sizes = [8, 128], strides = [1, 1]} : vector<16x128xf32> to vector<8x128xf32>
    %cst_101 = arith.constant dense<0.000000e+00> : vector<4x128xf32>
    %142 = tpu.matmul %140, %141, %cst_101 {dimension_numbers = #tpu.dot_dimension_numbers<[1], [0], [0], [1], [0, 0, 1, 1], [], []>} : vector<4x8xf32>, vector<8x128xf32>, vector<4x128xf32> -> vector<4x128xf32>
    %143 = vector.extract_strided_slice %126 {offsets = [8, 0], sizes = [8, 128], strides = [1, 1]} : vector<16x128xf32> to vector<8x128xf32>
    %cst_102 = arith.constant dense<0.000000e+00> : vector<4x128xf32>
    %144 = tpu.matmul %140, %143, %cst_102 {dimension_numbers = #tpu.dot_dimension_numbers<[1], [0], [0], [1], [0, 0, 1, 1], [], []>} : vector<4x8xf32>, vector<8x128xf32>, vector<4x128xf32> -> vector<4x128xf32>
    %145 = tpu.concatenate %142, %144 in 0 : vector<4x128xf32>, vector<4x128xf32> -> vector<8x128xf32>
    %c1_103 = arith.constant 1 : index
    %c0_104 = arith.constant 0 : index
    %c0_105 = arith.constant 0 : index
    %146 = vector.load %arg9[%c1_103, %c0_104, %c0_105] : memref<4x128x128xf32, #tpu.memory_space<vmem>>, vector<1x128x128xf32>
    %147 = vector.shape_cast %146 : vector<1x128x128xf32> to vector<128x128xf32>
    %cst_106 = arith.constant dense<0.000000e+00> : vector<8x128xf32>
    %148 = tpu.matmul %145, %147, %cst_106 {dimension_numbers = #tpu.dot_dimension_numbers<[1], [0], [0], [1], [0, 0, 1, 1], [], []>} : vector<8x128xf32>, vector<128x128xf32>, vector<8x128xf32> -> vector<8x128xf32>
    %149 = arith.addf %138, %148 : vector<8x128xf32>
    %c2_107 = arith.constant 2 : index
    %c0_108 = arith.constant 0 : index
    %c0_109 = arith.constant 0 : index
    %150 = vector.load %arg8[%c2_107, %c0_108, %c0_109] : memref<4x4x8xf32, #tpu.memory_space<vmem>>, vector<1x4x8xf32>
    %151 = vector.shape_cast %150 : vector<1x4x8xf32> to vector<4x8xf32>
    %152 = vector.extract_strided_slice %126 {offsets = [0, 0], sizes = [8, 128], strides = [1, 1]} : vector<16x128xf32> to vector<8x128xf32>
    %cst_110 = arith.constant dense<0.000000e+00> : vector<4x128xf32>
    %153 = tpu.matmul %151, %152, %cst_110 {dimension_numbers = #tpu.dot_dimension_numbers<[1], [0], [0], [1], [0, 0, 1, 1], [], []>} : vector<4x8xf32>, vector<8x128xf32>, vector<4x128xf32> -> vector<4x128xf32>
    %154 = vector.extract_strided_slice %126 {offsets = [8, 0], sizes = [8, 128], strides = [1, 1]} : vector<16x128xf32> to vector<8x128xf32>
    %cst_111 = arith.constant dense<0.000000e+00> : vector<4x128xf32>
    %155 = tpu.matmul %151, %154, %cst_111 {dimension_numbers = #tpu.dot_dimension_numbers<[1], [0], [0], [1], [0, 0, 1, 1], [], []>} : vector<4x8xf32>, vector<8x128xf32>, vector<4x128xf32> -> vector<4x128xf32>
    %156 = tpu.concatenate %153, %155 in 0 : vector<4x128xf32>, vector<4x128xf32> -> vector<8x128xf32>
    %c2_112 = arith.constant 2 : index
    %c0_113 = arith.constant 0 : index
    %c0_114 = arith.constant 0 : index
    %157 = vector.load %arg9[%c2_112, %c0_113, %c0_114] : memref<4x128x128xf32, #tpu.memory_space<vmem>>, vector<1x128x128xf32>
    %158 = vector.shape_cast %157 : vector<1x128x128xf32> to vector<128x128xf32>
    %cst_115 = arith.constant dense<0.000000e+00> : vector<8x128xf32>
    %159 = tpu.matmul %156, %158, %cst_115 {dimension_numbers = #tpu.dot_dimension_numbers<[1], [0], [0], [1], [0, 0, 1, 1], [], []>} : vector<8x128xf32>, vector<128x128xf32>, vector<8x128xf32> -> vector<8x128xf32>
    %160 = arith.addf %149, %159 : vector<8x128xf32>
    %c3_116 = arith.constant 3 : index
    %c0_117 = arith.constant 0 : index
    %c0_118 = arith.constant 0 : index
    %161 = vector.load %arg8[%c3_116, %c0_117, %c0_118] : memref<4x4x8xf32, #tpu.memory_space<vmem>>, vector<1x4x8xf32>
    %162 = vector.shape_cast %161 : vector<1x4x8xf32> to vector<4x8xf32>
    %163 = vector.extract_strided_slice %126 {offsets = [0, 0], sizes = [8, 128], strides = [1, 1]} : vector<16x128xf32> to vector<8x128xf32>
    %cst_119 = arith.constant dense<0.000000e+00> : vector<4x128xf32>
    %164 = tpu.matmul %162, %163, %cst_119 {dimension_numbers = #tpu.dot_dimension_numbers<[1], [0], [0], [1], [0, 0, 1, 1], [], []>} : vector<4x8xf32>, vector<8x128xf32>, vector<4x128xf32> -> vector<4x128xf32>
    %165 = vector.extract_strided_slice %126 {offsets = [8, 0], sizes = [8, 128], strides = [1, 1]} : vector<16x128xf32> to vector<8x128xf32>
    %cst_120 = arith.constant dense<0.000000e+00> : vector<4x128xf32>
    %166 = tpu.matmul %162, %165, %cst_120 {dimension_numbers = #tpu.dot_dimension_numbers<[1], [0], [0], [1], [0, 0, 1, 1], [], []>} : vector<4x8xf32>, vector<8x128xf32>, vector<4x128xf32> -> vector<4x128xf32>
    %167 = tpu.concatenate %164, %166 in 0 : vector<4x128xf32>, vector<4x128xf32> -> vector<8x128xf32>
    %c3_121 = arith.constant 3 : index
    %c0_122 = arith.constant 0 : index
    %c0_123 = arith.constant 0 : index
    %168 = vector.load %arg9[%c3_121, %c0_122, %c0_123] : memref<4x128x128xf32, #tpu.memory_space<vmem>>, vector<1x128x128xf32>
    %169 = vector.shape_cast %168 : vector<1x128x128xf32> to vector<128x128xf32>
    %cst_124 = arith.constant dense<0.000000e+00> : vector<8x128xf32>
    %170 = tpu.matmul %167, %169, %cst_124 {dimension_numbers = #tpu.dot_dimension_numbers<[1], [0], [0], [1], [0, 0, 1, 1], [], []>} : vector<8x128xf32>, vector<128x128xf32>, vector<8x128xf32> -> vector<8x128xf32>
    %171 = arith.addf %160, %170 : vector<8x128xf32>
    %c0_125 = arith.constant 0 : index
    %c0_126 = arith.constant 0 : index
    %172 = vector.load %arg10[%c0_125, %c0_126] : memref<1x128xf32, #tpu.memory_space<vmem>>, vector<1x128xf32>
    %c0_127 = arith.constant 0 : index
    %c0_128 = arith.constant 0 : index
    %173 = vector.load %arg11[%c0_127, %c0_128] : memref<1x128xf32, #tpu.memory_space<vmem>>, vector<1x128xf32>
    %c0_129 = arith.constant 0 : index
    %c0_130 = arith.constant 0 : index
    %174 = vector.load %arg12[%c0_129, %c0_130] : memref<128x128xf32, #tpu.memory_space<vmem>>, vector<128x128xf32>
    %cst_131 = arith.constant dense<0.000000e+00> : vector<128xf32>
    %175 = vector.multi_reduction <add>, %171, %cst_131 [0] : vector<8x128xf32> to vector<128xf32>
    %176 = vector.shape_cast %175 : vector<128xf32> to vector<1x128xf32>
    %177 = arith.mulf %171, %171 : vector<8x128xf32>
    %cst_132 = arith.constant dense<0.000000e+00> : vector<128xf32>
    %178 = vector.multi_reduction <add>, %177, %cst_132 [0] : vector<8x128xf32> to vector<128xf32>
    %179 = vector.shape_cast %178 : vector<128xf32> to vector<1x128xf32>
    %cst_133 = arith.constant dense<0.000000e+00> : vector<1x128xf32>
    %180 = tpu.matmul %176, %174, %cst_133 {dimension_numbers = #tpu.dot_dimension_numbers<[1], [0], [0], [1], [0, 0, 1, 1], [], []>} : vector<1x128xf32>, vector<128x128xf32>, vector<1x128xf32> -> vector<1x128xf32>
    %cst_134 = arith.constant 3.125000e-02 : f32
    %181 = vector.broadcast %cst_134 : f32 to vector<1x128xf32>
    %182 = arith.mulf %180, %181 : vector<1x128xf32>
    %cst_135 = arith.constant dense<0.000000e+00> : vector<1x128xf32>
    %183 = tpu.matmul %179, %174, %cst_135 {dimension_numbers = #tpu.dot_dimension_numbers<[1], [0], [0], [1], [0, 0, 1, 1], [], []>} : vector<1x128xf32>, vector<128x128xf32>, vector<1x128xf32> -> vector<1x128xf32>
    %cst_136 = arith.constant 3.125000e-02 : f32
    %184 = vector.broadcast %cst_136 : f32 to vector<1x128xf32>
    %185 = arith.mulf %183, %184 : vector<1x128xf32>
    %186 = arith.mulf %182, %182 : vector<1x128xf32>
    %187 = arith.subf %185, %186 : vector<1x128xf32>
    %cst_137 = arith.constant 9.99999974E-6 : f32
    %188 = vector.broadcast %cst_137 : f32 to vector<1x128xf32>
    %189 = arith.addf %187, %188 : vector<1x128xf32>
    %190 = math.rsqrt %189 : vector<1x128xf32>
    %191 = arith.mulf %190, %172 : vector<1x128xf32>
    %192 = vector.broadcast %182 : vector<1x128xf32> to vector<8x128xf32>
    %193 = arith.subf %171, %192 : vector<8x128xf32>
    %194 = vector.broadcast %191 : vector<1x128xf32> to vector<8x128xf32>
    %195 = arith.mulf %193, %194 : vector<8x128xf32>
    %196 = vector.broadcast %173 : vector<1x128xf32> to vector<8x128xf32>
    %197 = arith.addf %195, %196 : vector<8x128xf32>
    %cst_138 = arith.constant 0.000000e+00 : f32
    %198 = vector.broadcast %cst_138 : f32 to vector<8x128xf32>
    %199 = arith.cmpf oge, %197, %198 : vector<8x128xf32>
    %cst_139 = arith.constant 2.000000e-01 : f32
    %200 = vector.broadcast %cst_139 : f32 to vector<8x128xf32>
    %201 = arith.mulf %200, %197 : vector<8x128xf32>
    %202 = arith.select %199, %197, %201 : vector<8x128xi1>, vector<8x128xf32>
    %cst_140 = arith.constant 0.000000e+00 : f32
    %203 = vector.broadcast %cst_140 : f32 to vector<2x1xf32>
    %c0_141 = arith.constant 0 : index
    %c0_142 = arith.constant 0 : index
    %c0_143 = arith.constant 0 : index
    %204 = vector.load %arg13[%c0_141, %c0_142, %c0_143] : memref<4x1x4xf32, #tpu.memory_space<vmem>>, vector<1x1x4xf32>
    %205 = vector.shape_cast %204 : vector<1x1x4xf32> to vector<1x4xf32>
    %206 = vector.extract_strided_slice %202 {offsets = [0, 0], sizes = [4, 128], strides = [1, 1]} : vector<8x128xf32> to vector<4x128xf32>
    %cst_144 = arith.constant dense<0.000000e+00> : vector<1x128xf32>
    %207 = tpu.matmul %205, %206, %cst_144 {dimension_numbers = #tpu.dot_dimension_numbers<[1], [0], [0], [1], [0, 0, 1, 1], [], []>} : vector<1x4xf32>, vector<4x128xf32>, vector<1x128xf32> -> vector<1x128xf32>
    %208 = vector.extract_strided_slice %202 {offsets = [4, 0], sizes = [4, 128], strides = [1, 1]} : vector<8x128xf32> to vector<4x128xf32>
    %cst_145 = arith.constant dense<0.000000e+00> : vector<1x128xf32>
    %209 = tpu.matmul %205, %208, %cst_145 {dimension_numbers = #tpu.dot_dimension_numbers<[1], [0], [0], [1], [0, 0, 1, 1], [], []>} : vector<1x4xf32>, vector<4x128xf32>, vector<1x128xf32> -> vector<1x128xf32>
    %210 = tpu.concatenate %207, %209 in 0 : vector<1x128xf32>, vector<1x128xf32> -> vector<2x128xf32>
    %c0_146 = arith.constant 0 : index
    %c0_147 = arith.constant 0 : index
    %c0_148 = arith.constant 0 : index
    %211 = vector.load %arg14[%c0_146, %c0_147, %c0_148] : memref<4x128x1xf32, #tpu.memory_space<vmem>>, vector<1x128x1xf32>
    %212 = vector.shape_cast %211 : vector<1x128x1xf32> to vector<128x1xf32>
    %cst_149 = arith.constant dense<0.000000e+00> : vector<2x1xf32>
    %213 = tpu.matmul %210, %212, %cst_149 {dimension_numbers = #tpu.dot_dimension_numbers<[1], [0], [0], [1], [0, 0, 1, 1], [], []>} : vector<2x128xf32>, vector<128x1xf32>, vector<2x1xf32> -> vector<2x1xf32>
    %214 = arith.addf %203, %213 : vector<2x1xf32>
    %c1_150 = arith.constant 1 : index
    %c0_151 = arith.constant 0 : index
    %c0_152 = arith.constant 0 : index
    %215 = vector.load %arg13[%c1_150, %c0_151, %c0_152] : memref<4x1x4xf32, #tpu.memory_space<vmem>>, vector<1x1x4xf32>
    %216 = vector.shape_cast %215 : vector<1x1x4xf32> to vector<1x4xf32>
    %217 = vector.extract_strided_slice %202 {offsets = [0, 0], sizes = [4, 128], strides = [1, 1]} : vector<8x128xf32> to vector<4x128xf32>
    %cst_153 = arith.constant dense<0.000000e+00> : vector<1x128xf32>
    %218 = tpu.matmul %216, %217, %cst_153 {dimension_numbers = #tpu.dot_dimension_numbers<[1], [0], [0], [1], [0, 0, 1, 1], [], []>} : vector<1x4xf32>, vector<4x128xf32>, vector<1x128xf32> -> vector<1x128xf32>
    %219 = vector.extract_strided_slice %202 {offsets = [4, 0], sizes = [4, 128], strides = [1, 1]} : vector<8x128xf32> to vector<4x128xf32>
    %cst_154 = arith.constant dense<0.000000e+00> : vector<1x128xf32>
    %220 = tpu.matmul %216, %219, %cst_154 {dimension_numbers = #tpu.dot_dimension_numbers<[1], [0], [0], [1], [0, 0, 1, 1], [], []>} : vector<1x4xf32>, vector<4x128xf32>, vector<1x128xf32> -> vector<1x128xf32>
    %221 = tpu.concatenate %218, %220 in 0 : vector<1x128xf32>, vector<1x128xf32> -> vector<2x128xf32>
    %c1_155 = arith.constant 1 : index
    %c0_156 = arith.constant 0 : index
    %c0_157 = arith.constant 0 : index
    %222 = vector.load %arg14[%c1_155, %c0_156, %c0_157] : memref<4x128x1xf32, #tpu.memory_space<vmem>>, vector<1x128x1xf32>
    %223 = vector.shape_cast %222 : vector<1x128x1xf32> to vector<128x1xf32>
    %cst_158 = arith.constant dense<0.000000e+00> : vector<2x1xf32>
    %224 = tpu.matmul %221, %223, %cst_158 {dimension_numbers = #tpu.dot_dimension_numbers<[1], [0], [0], [1], [0, 0, 1, 1], [], []>} : vector<2x128xf32>, vector<128x1xf32>, vector<2x1xf32> -> vector<2x1xf32>
    %225 = arith.addf %214, %224 : vector<2x1xf32>
    %c2_159 = arith.constant 2 : index
    %c0_160 = arith.constant 0 : index
    %c0_161 = arith.constant 0 : index
    %226 = vector.load %arg13[%c2_159, %c0_160, %c0_161] : memref<4x1x4xf32, #tpu.memory_space<vmem>>, vector<1x1x4xf32>
    %227 = vector.shape_cast %226 : vector<1x1x4xf32> to vector<1x4xf32>
    %228 = vector.extract_strided_slice %202 {offsets = [0, 0], sizes = [4, 128], strides = [1, 1]} : vector<8x128xf32> to vector<4x128xf32>
    %cst_162 = arith.constant dense<0.000000e+00> : vector<1x128xf32>
    %229 = tpu.matmul %227, %228, %cst_162 {dimension_numbers = #tpu.dot_dimension_numbers<[1], [0], [0], [1], [0, 0, 1, 1], [], []>} : vector<1x4xf32>, vector<4x128xf32>, vector<1x128xf32> -> vector<1x128xf32>
    %230 = vector.extract_strided_slice %202 {offsets = [4, 0], sizes = [4, 128], strides = [1, 1]} : vector<8x128xf32> to vector<4x128xf32>
    %cst_163 = arith.constant dense<0.000000e+00> : vector<1x128xf32>
    %231 = tpu.matmul %227, %230, %cst_163 {dimension_numbers = #tpu.dot_dimension_numbers<[1], [0], [0], [1], [0, 0, 1, 1], [], []>} : vector<1x4xf32>, vector<4x128xf32>, vector<1x128xf32> -> vector<1x128xf32>
    %232 = tpu.concatenate %229, %231 in 0 : vector<1x128xf32>, vector<1x128xf32> -> vector<2x128xf32>
    %c2_164 = arith.constant 2 : index
    %c0_165 = arith.constant 0 : index
    %c0_166 = arith.constant 0 : index
    %233 = vector.load %arg14[%c2_164, %c0_165, %c0_166] : memref<4x128x1xf32, #tpu.memory_space<vmem>>, vector<1x128x1xf32>
    %234 = vector.shape_cast %233 : vector<1x128x1xf32> to vector<128x1xf32>
    %cst_167 = arith.constant dense<0.000000e+00> : vector<2x1xf32>
    %235 = tpu.matmul %232, %234, %cst_167 {dimension_numbers = #tpu.dot_dimension_numbers<[1], [0], [0], [1], [0, 0, 1, 1], [], []>} : vector<2x128xf32>, vector<128x1xf32>, vector<2x1xf32> -> vector<2x1xf32>
    %236 = arith.addf %225, %235 : vector<2x1xf32>
    %c3_168 = arith.constant 3 : index
    %c0_169 = arith.constant 0 : index
    %c0_170 = arith.constant 0 : index
    %237 = vector.load %arg13[%c3_168, %c0_169, %c0_170] : memref<4x1x4xf32, #tpu.memory_space<vmem>>, vector<1x1x4xf32>
    %238 = vector.shape_cast %237 : vector<1x1x4xf32> to vector<1x4xf32>
    %239 = vector.extract_strided_slice %202 {offsets = [0, 0], sizes = [4, 128], strides = [1, 1]} : vector<8x128xf32> to vector<4x128xf32>
    %cst_171 = arith.constant dense<0.000000e+00> : vector<1x128xf32>
    %240 = tpu.matmul %238, %239, %cst_171 {dimension_numbers = #tpu.dot_dimension_numbers<[1], [0], [0], [1], [0, 0, 1, 1], [], []>} : vector<1x4xf32>, vector<4x128xf32>, vector<1x128xf32> -> vector<1x128xf32>
    %241 = vector.extract_strided_slice %202 {offsets = [4, 0], sizes = [4, 128], strides = [1, 1]} : vector<8x128xf32> to vector<4x128xf32>
    %cst_172 = arith.constant dense<0.000000e+00> : vector<1x128xf32>
    %242 = tpu.matmul %238, %241, %cst_172 {dimension_numbers = #tpu.dot_dimension_numbers<[1], [0], [0], [1], [0, 0, 1, 1], [], []>} : vector<1x4xf32>, vector<4x128xf32>, vector<1x128xf32> -> vector<1x128xf32>
    %243 = tpu.concatenate %240, %242 in 0 : vector<1x128xf32>, vector<1x128xf32> -> vector<2x128xf32>
    %c3_173 = arith.constant 3 : index
    %c0_174 = arith.constant 0 : index
    %c0_175 = arith.constant 0 : index
    %244 = vector.load %arg14[%c3_173, %c0_174, %c0_175] : memref<4x128x1xf32, #tpu.memory_space<vmem>>, vector<1x128x1xf32>
    %245 = vector.shape_cast %244 : vector<1x128x1xf32> to vector<128x1xf32>
    %cst_176 = arith.constant dense<0.000000e+00> : vector<2x1xf32>
    %246 = tpu.matmul %243, %245, %cst_176 {dimension_numbers = #tpu.dot_dimension_numbers<[1], [0], [0], [1], [0, 0, 1, 1], [], []>} : vector<2x128xf32>, vector<128x1xf32>, vector<2x1xf32> -> vector<2x1xf32>
    %247 = arith.addf %236, %246 : vector<2x1xf32>
    %cst_177 = arith.constant 0.000000e+00 : f32
    %248 = vector.broadcast %cst_177 : f32 to vector<2x1xf32>
    %249 = arith.subf %248, %247 : vector<2x1xf32>
    %250 = math.exp %249 : vector<2x1xf32>
    %cst_178 = arith.constant 1.000000e+00 : f32
    %251 = vector.broadcast %cst_178 : f32 to vector<2x1xf32>
    %252 = arith.addf %251, %250 : vector<2x1xf32>
    %cst_179 = arith.constant 1.000000e+00 : f32
    %253 = vector.broadcast %cst_179 : f32 to vector<2x1xf32>
    %254 = arith.divf %253, %252 : vector<2x1xf32>
    %c0_180 = arith.constant 0 : index
    %c0_181 = arith.constant 0 : index
    %255 = vector.load %arg15[%c0_180, %c0_181] : memref<2x1xf32, #tpu.memory_space<vmem>>, vector<2x1xf32>
    tpu.vector_store %arg15[%c0_180, %c0_181], %254 {strides = array<i32>} : memref<2x1xf32, #tpu.memory_space<vmem>>, vector<2x1xf32>,
    return
  }
}

</mosaic_0001>

<llo_original>
// kernel: tile.23
$region0: #{tile.23}
  #allocation0 [shape = 's32[1]{0}', space=sflag, size = 0x4, scoped, tag = 'scoped memory for tile.23']
  %s0 = inlined_call_operand.vmem [shape: f32[16], index: 0, kind: input, shape index: {}]
  %s1 = inlined_call_operand.vmem [shape: f32[8,16], index: 1, kind: output, shape index: {}]
  // Predicated region
  $region2: #{tile.23} parent=0 // pred_check
    _
  $region3: #{tile.23} parent=0 // pred_check_branch
    %3 = sbr.rel (0) target = $region5
  $region4: #{tile.23} parent=0 // pred_region
    _
  $region5: #{tile.23} parent=0 // pred_fallthru
    _
  %v4 = vld [vmem:[%s0] ss:$0 sm:$0xff]
  %5 = vst [vmem:[%s1] sm:$0xff] %v4

// kernel: tile.24
$region0: #{tile.24}
  %s0 = inlined_call_operand.vmem [shape: f32[8,16], index: 0, kind: input, shape index: {}]
  %s1 = inlined_call_operand.vmem [shape: f32[1,128], index: 1, kind: output, shape index: {}]
  $region1: #{tile.24} parent=0
    #allocation0 [shape = 'u8[4096]{0}', space=vmem, size = 0x1000, scoped, tag = 'scoped mem for output reshape']
    %v2 = vld [vmem:[%s0] sm:$0x1]
    %vm3 = vcmask 130048
    %4 = vst.msk [vmem:[#allocation0] sm:$0x1] %vm3, %v2
    %s5 = scalar_lea.vmem %s0, 7
    %v6 = vld [vmem:[%s5] sm:$0x1]
    %7 = vrot.lane.b32.xlu0 %v6, 112
    %v8 = vpop.permute.xlu0 %7
    %vm9 = vcmask 1048448
    %10 = vst.msk [vmem:[#allocation0] sm:$0x1] %vm9, %v8
    %s11 = scalar_lea.vmem %s0, 6
    %v12 = vld [vmem:[%s11] sm:$0x1]
    %13 = vrot.lane.b32.xlu0 %v12, 96
    %v14 = vpop.permute.xlu0 %13
    %vm15 = vcmask 917248
    %16 = vst.msk [vmem:[#allocation0] sm:$0x1] %vm15, %v14
    %s17 = scalar_lea.vmem %s0, 5
    %v18 = vld [vmem:[%s17] sm:$0x1]
    %19 = vrot.lane.b32.xlu0 %v18, 80
    %v20 = vpop.permute.xlu0 %19
    %vm21 = vcmask 786048
    %22 = vst.msk [vmem:[#allocation0] sm:$0x1] %vm21, %v20
    %s23 = scalar_lea.vmem %s0, 4
    %v24 = vld [vmem:[%s23] sm:$0x1]
    %25 = vrot.lane.b32.xlu0 %v24, 64
    %v26 = vpop.permute.xlu0 %25
    %vm27 = vcmask 654848
    %28 = vst.msk [vmem:[#allocation0] sm:$0x1] %vm27, %v26
    %s29 = scalar_lea.vmem %s0, 3
    %v30 = vld [vmem:[%s29] sm:$0x1]
    %31 = vrot.lane.b32.xlu0 %v30, 48
    %v32 = vpop.permute.xlu0 %31
    %vm33 = vcmask 523648
    %34 = vst.msk [vmem:[#allocation0] sm:$0x1] %vm33, %v32
    %s35 = scalar_lea.vmem %s0, 2
    %v36 = vld [vmem:[%s35] sm:$0x1]
    %37 = vrot.lane.b32.xlu0 %v36, 32
    %v38 = vpop.permute.xlu0 %37
    %vm39 = vcmask 392448
    %40 = vst.msk [vmem:[#allocation0] sm:$0x1] %vm39, %v38
    %s41 = scalar_lea.vmem %s0, 1
    %v42 = vld [vmem:[%s41] sm:$0x1]
    %43 = vrot.lane.b32.xlu0 %v42, 16
    %v44 = vpop.permute.xlu0 %43
    %vm45 = vcmask 261248
    %46 = vst.msk [vmem:[#allocation0] sm:$0x1] %vm45, %v44
    %s48 = ssub.s32 2, 1
    %v49 = vld [vmem:[#allocation0] sm:%s48]
    %s51 = ssub.s32 2, 1
    %52 = vst [vmem:[%s1] sm:%s51] %v49

// kernel: tile.33
$region0: #{tile.33}
  #allocation0 [shape = 's32[1]{0}', space=sflag, size = 0x4, scoped, tag = 'scoped memory for tile.33']
  %s0 = inlined_call_operand.vmem [shape: f32[32], index: 0, kind: input, shape index: {}]
  %s1 = inlined_call_operand.vmem [shape: f32[4,32], index: 1, kind: output, shape index: {}]
  // Predicated region
  $region2: #{tile.33} parent=0 // pred_check
    _
  $region3: #{tile.33} parent=0 // pred_check_branch
    %3 = sbr.rel (0) target = $region5
  $region4: #{tile.33} parent=0 // pred_region
    _
  $region5: #{tile.33} parent=0 // pred_fallthru
    _
  %v4 = vld [vmem:[%s0] ss:$0 sm:$0xff]
  %5 = vst [vmem:[%s1] sm:$0xf] %v4

// kernel: tile.34
$region0: #{tile.34}
  %s0 = inlined_call_operand.vmem [shape: f32[4,32], index: 0, kind: input, shape index: {}]
  %s1 = inlined_call_operand.vmem [shape: f32[1,128], index: 1, kind: output, shape index: {}]
  $region1: #{tile.34} parent=0
    #allocation0 [shape = 'u8[4096]{0}', space=vmem, size = 0x1000, scoped, tag = 'scoped mem for output reshape']
    #allocation1 [shape = 'u8[4096]{0}', space=vmem, size = 0x1000, scoped, tag = 'scoped mem for input reshape']
    %s3 = ssub.s32 16, 1
    %v4 = vld [vmem:[%s0] sm:%s3]
    %5 = vst [vmem:[#allocation1] sm:%s3] %v4
    %v6 = vld [vmem:[#allocation1] sm:$0x1]
    %vm7 = vcmask 261120
    %8 = vst.msk [vmem:[#allocation0] sm:$0x1] %vm7, %v6
    %s9 = scalar_lea.vmem [#allocation1], 3
    %v10 = vld [vmem:[%s9] sm:$0x1]
    %11 = vrot.lane.b32.xlu0 %v10, 96
    %v12 = vpop.permute.xlu0 %11
    %vm13 = vcmask 1048320
    %14 = vst.msk [vmem:[#allocation0] sm:$0x1] %vm13, %v12
    %s15 = scalar_lea.vmem [#allocation1], 2
    %v16 = vld [vmem:[%s15] sm:$0x1]
    %17 = vrot.lane.b32.xlu0 %v16, 64
    %v18 = vpop.permute.xlu0 %17
    %vm19 = vcmask 785920
    %20 = vst.msk [vmem:[#allocation0] sm:$0x1] %vm19, %v18
    %s21 = scalar_lea.vmem [#allocation1], 1
    %v22 = vld [vmem:[%s21] sm:$0x1]
    %23 = vrot.lane.b32.xlu0 %v22, 32
    %v24 = vpop.permute.xlu0 %23
    %vm25 = vcmask 523520
    %26 = vst.msk [vmem:[#allocation0] sm:$0x1] %vm25, %v24
    %s28 = ssub.s32 2, 1
    %v29 = vld [vmem:[#allocation0] sm:%s28]
    %s31 = ssub.s32 2, 1
    %32 = vst [vmem:[%s1] sm:%s31] %v29

// kernel: discriminator_forward.1
$region0: #{discriminator_forward.1}
  #allocation0 [shape = 'u32[]', space=smem, size = 0x4, offset = 0x4, fixed_abs, tag = 'smem constant byte address 0x4 - core index']
  #allocation1 [shape = 'u32[72,128]{1,0:T(1,128)}', space=vmem, size = 0x9000, scoped, tag = 'internal scratch']
  %s0 = inlined_call_operand.vmem [shape: f32[64,32], index: 0, kind: input, shape index: {}]
  %s1 = inlined_call_operand.vmem [shape: f32[4,16,32], index: 1, kind: input, shape index: {}]
  %s2 = inlined_call_operand.vmem [shape: f32[4,32,128], index: 2, kind: input, shape index: {}]
  %s3 = inlined_call_operand.vmem [shape: f32[4,8,16], index: 3, kind: input, shape index: {}]
  %s4 = inlined_call_operand.vmem [shape: f32[4,128,128], index: 4, kind: input, shape index: {}]
  %s5 = inlined_call_operand.vmem [shape: f32[1,128], index: 5, kind: input, shape index: {}]
  %s6 = inlined_call_operand.vmem [shape: f32[1,128], index: 6, kind: input, shape index: {}]
  %s7 = inlined_call_operand.vmem [shape: f32[128,128], index: 7, kind: input, shape index: {}]
  %s8 = inlined_call_operand.vmem [shape: f32[4,4,8], index: 8, kind: input, shape index: {}]
  %s9 = inlined_call_operand.vmem [shape: f32[4,128,128], index: 9, kind: input, shape index: {}]
  %s10 = inlined_call_operand.vmem [shape: f32[1,128], index: 10, kind: input, shape index: {}]
  %s11 = inlined_call_operand.vmem [shape: f32[1,128], index: 11, kind: input, shape index: {}]
  %s12 = inlined_call_operand.vmem [shape: f32[128,128], index: 12, kind: input, shape index: {}]
  %s13 = inlined_call_operand.vmem [shape: f32[4,1,4], index: 13, kind: input, shape index: {}]
  %s14 = inlined_call_operand.vmem [shape: f32[4,128,1], index: 14, kind: input, shape index: {}]
  %s15 = inlined_call_operand.vmem [shape: f32[2,1], index: 15, kind: output, shape index: {}]
  %s16 = sld [smem:[#allocation0]]
  $region70: #{discriminator_forward.1} parent=0
    _
  %s18 = ssub.s32 1, %s16
  %s19 = scalar_select 0, %s18, %s16
  // Predicated region
  $region2: #{discriminator_forward.1} parent=0 // pred_check
    _
  $region3: #{discriminator_forward.1} parent=0 // pred_check_branch
    %21 = sbr.rel (0) target = $region5
  $region4: #{discriminator_forward.1} parent=0 // pred_region
    _
  $region5: #{discriminator_forward.1} parent=0 // pred_fallthru
    _
  // Predicated region
  $region6: #{discriminator_forward.1} parent=0 // pred_check
    _
  $region7: #{discriminator_forward.1} parent=0 // pred_check_branch
    %23 = sbr.rel (0) target = $region9
  $region8: #{discriminator_forward.1} parent=0 // pred_region
    _
  $region9: #{discriminator_forward.1} parent=0 // pred_fallthru
    _
  // Predicated region
  $region10: #{discriminator_forward.1} parent=0 // pred_check
    _
  $region11: #{discriminator_forward.1} parent=0 // pred_check_branch
    %25 = sbr.rel (0) target = $region13
  $region12: #{discriminator_forward.1} parent=0 // pred_region
    _
  $region13: #{discriminator_forward.1} parent=0 // pred_fallthru
    _
  // Predicated region
  $region14: #{discriminator_forward.1} parent=0 // pred_check
    _
  $region15: #{discriminator_forward.1} parent=0 // pred_check_branch
    %27 = sbr.rel (0) target = $region17
  $region16: #{discriminator_forward.1} parent=0 // pred_region
    _
  $region17: #{discriminator_forward.1} parent=0 // pred_fallthru
    _
  // Predicated region
  $region18: #{discriminator_forward.1} parent=0 // pred_check
    _
  $region19: #{discriminator_forward.1} parent=0 // pred_check_branch
    %29 = sbr.rel (0) target = $region21
  $region20: #{discriminator_forward.1} parent=0 // pred_region
    _
  $region21: #{discriminator_forward.1} parent=0 // pred_fallthru
    _
  // Predicated region
  $region22: #{discriminator_forward.1} parent=0 // pred_check
    _
  $region23: #{discriminator_forward.1} parent=0 // pred_check_branch
    %31 = sbr.rel (0) target = $region25
  $region24: #{discriminator_forward.1} parent=0 // pred_region
    _
  $region25: #{discriminator_forward.1} parent=0 // pred_fallthru
    _
  // Predicated region
  $region26: #{discriminator_forward.1} parent=0 // pred_check
    _
  $region27: #{discriminator_forward.1} parent=0 // pred_check_branch
    %33 = sbr.rel (0) target = $region29
  $region28: #{discriminator_forward.1} parent=0 // pred_region
    _
  $region29: #{discriminator_forward.1} parent=0 // pred_fallthru
    _
  // Predicated region
  $region30: #{discriminator_forward.1} parent=0 // pred_check
    _
  $region31: #{discriminator_forward.1} parent=0 // pred_check_branch
    %35 = sbr.rel (0) target = $region33
  $region32: #{discriminator_forward.1} parent=0 // pred_region
    _
  $region33: #{discriminator_forward.1} parent=0 // pred_fallthru
    _
  // Predicated region
  $region34: #{discriminator_forward.1} parent=0 // pred_check
    _
  $region35: #{discriminator_forward.1} parent=0 // pred_check_branch
    %37 = sbr.rel (0) target = $region37
  $region36: #{discriminator_forward.1} parent=0 // pred_region
    _
  $region37: #{discriminator_forward.1} parent=0 // pred_fallthru
    _
  // Predicated region
  $region38: #{discriminator_forward.1} parent=0 // pred_check
    _
  $region39: #{discriminator_forward.1} parent=0 // pred_check_branch
    %39 = sbr.rel (0) target = $region41
  $region40: #{discriminator_forward.1} parent=0 // pred_region
    _
  $region41: #{discriminator_forward.1} parent=0 // pred_fallthru
    _
  // Predicated region
  $region42: #{discriminator_forward.1} parent=0 // pred_check
    _
  $region43: #{discriminator_forward.1} parent=0 // pred_check_branch
    %41 = sbr.rel (0) target = $region45
  $region44: #{discriminator_forward.1} parent=0 // pred_region
    _
  $region45: #{discriminator_forward.1} parent=0 // pred_fallthru
    _
  // Predicated region
  $region46: #{discriminator_forward.1} parent=0 // pred_check
    _
  $region47: #{discriminator_forward.1} parent=0 // pred_check_branch
    %43 = sbr.rel (0) target = $region49
  $region48: #{discriminator_forward.1} parent=0 // pred_region
    _
  $region49: #{discriminator_forward.1} parent=0 // pred_fallthru
    _
  // Predicated region
  $region50: #{discriminator_forward.1} parent=0 // pred_check
    _
  $region51: #{discriminator_forward.1} parent=0 // pred_check_branch
    %45 = sbr.rel (0) target = $region53
  $region52: #{discriminator_forward.1} parent=0 // pred_region
    _
  $region53: #{discriminator_forward.1} parent=0 // pred_fallthru
    _
  // Predicated region
  $region54: #{discriminator_forward.1} parent=0 // pred_check
    _
  $region55: #{discriminator_forward.1} parent=0 // pred_check_branch
    %47 = sbr.rel (0) target = $region57
  $region56: #{discriminator_forward.1} parent=0 // pred_region
    _
  $region57: #{discriminator_forward.1} parent=0 // pred_fallthru
    _
  // Predicated region
  $region58: #{discriminator_forward.1} parent=0 // pred_check
    _
  $region59: #{discriminator_forward.1} parent=0 // pred_check_branch
    %49 = sbr.rel (0) target = $region61
  $region60: #{discriminator_forward.1} parent=0 // pred_region
    _
  $region61: #{discriminator_forward.1} parent=0 // pred_fallthru
    _
  %v50 = vld [vmem:[%s0] sm:$0xff]
  %v51 = vld [vmem:[%s0 + $0x8] sm:$0xff]
  %v52 = vld [vmem:[%s0 + $0x10] sm:$0xff]
  %v53 = vld [vmem:[%s0 + $0x18] sm:$0xff]
  %v54 = vld [vmem:[%s0 + $0x20] sm:$0xff]
  %v55 = vld [vmem:[%s0 + $0x28] sm:$0xff]
  %v56 = vld [vmem:[%s0 + $0x30] sm:$0xff]
  %v57 = vld [vmem:[%s0 + $0x38] sm:$0xff]
  %v58 = vld [vmem:[%s1] sm:$0xff]
  %v59 = vld [vmem:[%s1 + $0x8] sm:$0xff]
  %vm60 = vcmask 261120
  %v62 = vsel %vm60, %v58, 0
  %v65 = vsel %vm60, %v59, 0
  %67 = vmatpush.msra.mxu0 0.0
  %68 = vmatpush.msra.mxu0 0.0
  %69 = vmatpush.msra.mxu0 0.0
  %70 = vmatpush.msra.mxu0 0.0
  %71 = vmatpush.msra.mxu0 0.0
  %72 = vmatpush.msra.mxu0 0.0
  %73 = vmatpush.msra.mxu0 0.0
  %74 = vmatpush.msra.mxu0 0.0
  %75 = vmatpush.msra.mxu0 0.0
  %76 = vmatpush.msra.mxu0 0.0
  %77 = vmatpush.msra.mxu0 0.0
  %78 = vmatpush.msra.mxu0 0.0
  %79 = vmatpush.msra.mxu0 %v53
  %80 = vmatpush.msra.mxu0 %v52
  %81 = vmatpush.msra.mxu0 %v51
  %82 = vmatpush.msra.mxu0 %v50
  %83 = vmatmul.f32.gmra.mxu0 %v62
  %v84 = vpop.f32.mrf.mxu0
  %v85 = vadd.f32 0.0, %v84
  %86 = vmatmul.f32.gmra.mxu0 %v65
  %v87 = vpop.f32.mrf.mxu0
  %v88 = vadd.f32 0.0, %v87
  %89 = vdwg.mxu0
  %90 = vmatpush.msra.mxu0 0.0
  %91 = vmatpush.msra.mxu0 0.0
  %92 = vmatpush.msra.mxu0 0.0
  %93 = vmatpush.msra.mxu0 0.0
  %94 = vmatpush.msra.mxu0 0.0
  %95 = vmatpush.msra.mxu0 0.0
  %96 = vmatpush.msra.mxu0 0.0
  %97 = vmatpush.msra.mxu0 0.0
  %98 = vmatpush.msra.mxu0 0.0
  %99 = vmatpush.msra.mxu0 0.0
  %100 = vmatpush.msra.mxu0 0.0
  %101 = vmatpush.msra.mxu0 0.0
  %102 = vmatpush.msra.mxu0 %v57
  %103 = vmatpush.msra.mxu0 %v56
  %104 = vmatpush.msra.mxu0 %v55
  %105 = vmatpush.msra.mxu0 %v54
  %106 = vmatmul.f32.gmra.mxu0 %v62
  %v107 = vpop.f32.mrf.mxu0
  %v108 = vadd.f32 0.0, %v107
  %109 = vmatmul.f32.gmra.mxu0 %v65
  %v110 = vpop.f32.mrf.mxu0
  %v111 = vadd.f32 0.0, %v110
  %112 = vdwg.mxu0
  %v113 = vld [vmem:[%s2] sm:$0xff]
  %v114 = vld [vmem:[%s2 + $0x8] sm:$0xff]
  %v115 = vld [vmem:[%s2 + $0x10] sm:$0xff]
  %v116 = vld [vmem:[%s2 + $0x18] sm:$0xff]
  %s117 = scalar_lea.vmem %s1, 16
  %v118 = vld [vmem:[%s117] sm:$0xff]
  %v119 = vld [vmem:[%s117 + $0x8] sm:$0xff]
  %v121 = vsel %vm60, %v118, 0
  %v124 = vsel %vm60, %v119, 0
  %126 = vmatpush.msra.mxu0 0.0
  %127 = vmatpush.msra.mxu0 0.0
  %128 = vmatpush.msra.mxu0 0.0
  %129 = vmatpush.msra.mxu0 0.0
  %130 = vmatpush.msra.mxu0 0.0
  %131 = vmatpush.msra.mxu0 0.0
  %132 = vmatpush.msra.mxu0 0.0
  %133 = vmatpush.msra.mxu0 0.0
  %134 = vmatpush.msra.mxu0 0.0
  %135 = vmatpush.msra.mxu0 0.0
  %136 = vmatpush.msra.mxu0 0.0
  %137 = vmatpush.msra.mxu0 0.0
  %138 = vmatpush.msra.mxu0 %v53
  %139 = vmatpush.msra.mxu0 %v52
  %140 = vmatpush.msra.mxu0 %v51
  %141 = vmatpush.msra.mxu0 %v50
  %142 = vmatmul.f32.gmra.mxu0 %v121
  %v143 = vpop.f32.mrf.mxu0
  %v144 = vadd.f32 0.0, %v143
  %145 = vmatmul.f32.gmra.mxu0 %v124
  %v146 = vpop.f32.mrf.mxu0
  %v147 = vadd.f32 0.0, %v146
  %148 = vdwg.mxu0
  %149 = vmatpush.msra.mxu0 0.0
  %150 = vmatpush.msra.mxu0 0.0
  %151 = vmatpush.msra.mxu0 0.0
  %152 = vmatpush.msra.mxu0 0.0
  %153 = vmatpush.msra.mxu0 0.0
  %154 = vmatpush.msra.mxu0 0.0
  %155 = vmatpush.msra.mxu0 0.0
  %156 = vmatpush.msra.mxu0 0.0
  %157 = vmatpush.msra.mxu0 0.0
  %158 = vmatpush.msra.mxu0 0.0
  %159 = vmatpush.msra.mxu0 0.0
  %160 = vmatpush.msra.mxu0 0.0
  %161 = vmatpush.msra.mxu0 %v57
  %162 = vmatpush.msra.mxu0 %v56
  %163 = vmatpush.msra.mxu0 %v55
  %164 = vmatpush.msra.mxu0 %v54
  %165 = vmatmul.f32.gmra.mxu0 %v121
  %v166 = vpop.f32.mrf.mxu0
  %v167 = vadd.f32 0.0, %v166
  %168 = vmatmul.f32.gmra.mxu0 %v124
  %v169 = vpop.f32.mrf.mxu0
  %v170 = vadd.f32 0.0, %v169
  %171 = vdwg.mxu0
  %s172 = scalar_lea.vmem %s2, 32
  %v173 = vld [vmem:[%s172] sm:$0xff]
  %v174 = vld [vmem:[%s172 + $0x8] sm:$0xff]
  %v175 = vld [vmem:[%s172 + $0x10] sm:$0xff]
  %v176 = vld [vmem:[%s172 + $0x18] sm:$0xff]
  %v178 = vsel %vm60, %v144, 0
  %v181 = vsel %vm60, %v147, 0
  %v184 = vsel %vm60, %v167, 0
  %v187 = vsel %vm60, %v170, 0
  %189 = vmatpush.msra.mxu0 0.0
  %190 = vmatpush.msra.mxu0 0.0
  %191 = vmatpush.msra.mxu0 0.0
  %192 = vmatpush.msra.mxu0 0.0
  %193 = vmatpush.msra.mxu0 0.0
  %194 = vmatpush.msra.mxu0 0.0
  %195 = vmatpush.msra.mxu0 0.0
  %196 = vmatpush.msra.mxu0 0.0
  %197 = vmatpush.msra.mxu0 0.0
  %198 = vmatpush.msra.mxu0 0.0
  %199 = vmatpush.msra.mxu0 0.0
  %200 = vmatpush.msra.mxu0 0.0
  %201 = vmatpush.msra.mxu0 %v176
  %202 = vmatpush.msra.mxu0 %v175
  %203 = vmatpush.msra.mxu0 %v174
  %204 = vmatpush.msra.mxu0 %v173
  %205 = vmatmul.f32.gmra.mxu0 %v178
  %v206 = vpop.f32.mrf.mxu0
  %v207 = vadd.f32 0.0, %v206
  %208 = vmatmul.f32.gmra.mxu0 %v181
  %v209 = vpop.f32.mrf.mxu0
  %v210 = vadd.f32 0.0, %v209
  %211 = vmatmul.f32.gmra.mxu0 %v184
  %v212 = vpop.f32.mrf.mxu0
  %v213 = vadd.f32 0.0, %v212
  %214 = vmatmul.f32.gmra.mxu0 %v187
  %v215 = vpop.f32.mrf.mxu0
  %v216 = vadd.f32 0.0, %v215
  %217 = vdwg.mxu0
  %v219 = vsel %vm60, %v85, 0
  %v222 = vsel %vm60, %v88, 0
  %v225 = vsel %vm60, %v108, 0
  %v228 = vsel %vm60, %v111, 0
  %230 = vmatpush.msra.mxu0 0.0
  %231 = vmatpush.msra.mxu0 0.0
  %232 = vmatpush.msra.mxu0 0.0
  %233 = vmatpush.msra.mxu0 0.0
  %234 = vmatpush.msra.mxu0 0.0
  %235 = vmatpush.msra.mxu0 0.0
  %236 = vmatpush.msra.mxu0 0.0
  %237 = vmatpush.msra.mxu0 0.0
  %238 = vmatpush.msra.mxu0 0.0
  %239 = vmatpush.msra.mxu0 0.0
  %240 = vmatpush.msra.mxu0 0.0
  %241 = vmatpush.msra.mxu0 0.0
  %242 = vmatpush.msra.mxu0 %v116
  %243 = vmatpush.msra.mxu0 %v115
  %244 = vmatpush.msra.mxu0 %v114
  %245 = vmatpush.msra.mxu0 %v113
  %246 = vmatmul.f32.gmra.mxu0 %v219
  %v247 = vpop.f32.mrf.mxu0
  %v248 = vadd.f32 %v207, %v247
  %249 = vmatmul.f32.gmra.mxu0 %v222
  %v250 = vpop.f32.mrf.mxu0
  %v251 = vadd.f32 %v210, %v250
  %252 = vmatmul.f32.gmra.mxu0 %v225
  %v253 = vpop.f32.mrf.mxu0
  %v254 = vadd.f32 %v213, %v253
  %255 = vmatmul.f32.gmra.mxu0 %v228
  %v256 = vpop.f32.mrf.mxu0
  %v257 = vadd.f32 %v216, %v256
  %258 = vdwg.mxu0
  %s259 = scalar_lea.vmem %s1, 32
  %v260 = vld [vmem:[%s259] sm:$0xff]
  %v261 = vld [vmem:[%s259 + $0x8] sm:$0xff]
  %v263 = vsel %vm60, %v260, 0
  %v266 = vsel %vm60, %v261, 0
  %268 = vmatpush.msra.mxu0 0.0
  %269 = vmatpush.msra.mxu0 0.0
  %270 = vmatpush.msra.mxu0 0.0
  %271 = vmatpush.msra.mxu0 0.0
  %272 = vmatpush.msra.mxu0 0.0
  %273 = vmatpush.msra.mxu0 0.0
  %274 = vmatpush.msra.mxu0 0.0
  %275 = vmatpush.msra.mxu0 0.0
  %276 = vmatpush.msra.mxu0 0.0
  %277 = vmatpush.msra.mxu0 0.0
  %278 = vmatpush.msra.mxu0 0.0
  %279 = vmatpush.msra.mxu0 0.0
  %280 = vmatpush.msra.mxu0 %v53
  %281 = vmatpush.msra.mxu0 %v52
  %282 = vmatpush.msra.mxu0 %v51
  %283 = vmatpush.msra.mxu0 %v50
  %284 = vmatmul.f32.gmra.mxu0 %v263
  %v285 = vpop.f32.mrf.mxu0
  %v286 = vadd.f32 0.0, %v285
  %287 = vmatmul.f32.gmra.mxu0 %v266
  %v288 = vpop.f32.mrf.mxu0
  %v289 = vadd.f32 0.0, %v288
  %290 = vdwg.mxu0
  %291 = vmatpush.msra.mxu0 0.0
  %292 = vmatpush.msra.mxu0 0.0
  %293 = vmatpush.msra.mxu0 0.0
  %294 = vmatpush.msra.mxu0 0.0
  %295 = vmatpush.msra.mxu0 0.0
  %296 = vmatpush.msra.mxu0 0.0
  %297 = vmatpush.msra.mxu0 0.0
  %298 = vmatpush.msra.mxu0 0.0
  %299 = vmatpush.msra.mxu0 0.0
  %300 = vmatpush.msra.mxu0 0.0
  %301 = vmatpush.msra.mxu0 0.0
  %302 = vmatpush.msra.mxu0 0.0
  %303 = vmatpush.msra.mxu0 %v57
  %304 = vmatpush.msra.mxu0 %v56
  %305 = vmatpush.msra.mxu0 %v55
  %306 = vmatpush.msra.mxu0 %v54
  %307 = vmatmul.f32.gmra.mxu0 %v263
  %v308 = vpop.f32.mrf.mxu0
  %v309 = vadd.f32 0.0, %v308
  %310 = vmatmul.f32.gmra.mxu0 %v266
  %v311 = vpop.f32.mrf.mxu0
  %v312 = vadd.f32 0.0, %v311
  %313 = vdwg.mxu0
  %s314 = scalar_lea.vmem %s2, 64
  %v315 = vld [vmem:[%s314] sm:$0xff]
  %v316 = vld [vmem:[%s314 + $0x8] sm:$0xff]
  %v317 = vld [vmem:[%s314 + $0x10] sm:$0xff]
  %v318 = vld [vmem:[%s314 + $0x18] sm:$0xff]
  %v320 = vsel %vm60, %v286, 0
  %v323 = vsel %vm60, %v289, 0
  %v326 = vsel %vm60, %v309, 0
  %v329 = vsel %vm60, %v312, 0
  %331 = vmatpush.msra.mxu0 0.0
  %332 = vmatpush.msra.mxu0 0.0
  %333 = vmatpush.msra.mxu0 0.0
  %334 = vmatpush.msra.mxu0 0.0
  %335 = vmatpush.msra.mxu0 0.0
  %336 = vmatpush.msra.mxu0 0.0
  %337 = vmatpush.msra.mxu0 0.0
  %338 = vmatpush.msra.mxu0 0.0
  %339 = vmatpush.msra.mxu0 0.0
  %340 = vmatpush.msra.mxu0 0.0
  %341 = vmatpush.msra.mxu0 0.0
  %342 = vmatpush.msra.mxu0 0.0
  %343 = vmatpush.msra.mxu0 %v318
  %344 = vmatpush.msra.mxu0 %v317
  %345 = vmatpush.msra.mxu0 %v316
  %346 = vmatpush.msra.mxu0 %v315
  %347 = vmatmul.f32.gmra.mxu0 %v320
  %v348 = vpop.f32.mrf.mxu0
  %v349 = vadd.f32 0.0, %v348
  %350 = vmatmul.f32.gmra.mxu0 %v323
  %v351 = vpop.f32.mrf.mxu0
  %v352 = vadd.f32 0.0, %v351
  %353 = vmatmul.f32.gmra.mxu0 %v326
  %v354 = vpop.f32.mrf.mxu0
  %v355 = vadd.f32 0.0, %v354
  %356 = vmatmul.f32.gmra.mxu0 %v329
  %v357 = vpop.f32.mrf.mxu0
  %v358 = vadd.f32 0.0, %v357
  %359 = vdwg.mxu0
  %v360 = vadd.f32 %v248, %v349
  %v361 = vadd.f32 %v251, %v352
  %v362 = vadd.f32 %v254, %v355
  %v363 = vadd.f32 %v257, %v358
  %s364 = scalar_lea.vmem %s1, 48
  %v365 = vld [vmem:[%s364] sm:$0xff]
  %v366 = vld [vmem:[%s364 + $0x8] sm:$0xff]
  %v368 = vsel %vm60, %v365, 0
  %v371 = vsel %vm60, %v366, 0
  %373 = vmatpush.msra.mxu0 0.0
  %374 = vmatpush.msra.mxu0 0.0
  %375 = vmatpush.msra.mxu0 0.0
  %376 = vmatpush.msra.mxu0 0.0
  %377 = vmatpush.msra.mxu0 0.0
  %378 = vmatpush.msra.mxu0 0.0
  %379 = vmatpush.msra.mxu0 0.0
  %380 = vmatpush.msra.mxu0 0.0
  %381 = vmatpush.msra.mxu0 0.0
  %382 = vmatpush.msra.mxu0 0.0
  %383 = vmatpush.msra.mxu0 0.0
  %384 = vmatpush.msra.mxu0 0.0
  %385 = vmatpush.msra.mxu0 %v53
  %386 = vmatpush.msra.mxu0 %v52
  %387 = vmatpush.msra.mxu0 %v51
  %388 = vmatpush.msra.mxu0 %v50
  %389 = vmatmul.f32.gmra.mxu0 %v368
  %v390 = vpop.f32.mrf.mxu0
  %v391 = vadd.f32 0.0, %v390
  %392 = vmatmul.f32.gmra.mxu0 %v371
  %v393 = vpop.f32.mrf.mxu0
  %v394 = vadd.f32 0.0, %v393
  %395 = vdwg.mxu0
  %396 = vmatpush.msra.mxu0 0.0
  %397 = vmatpush.msra.mxu0 0.0
  %398 = vmatpush.msra.mxu0 0.0
  %399 = vmatpush.msra.mxu0 0.0
  %400 = vmatpush.msra.mxu0 0.0
  %401 = vmatpush.msra.mxu0 0.0
  %402 = vmatpush.msra.mxu0 0.0
  %403 = vmatpush.msra.mxu0 0.0
  %404 = vmatpush.msra.mxu0 0.0
  %405 = vmatpush.msra.mxu0 0.0
  %406 = vmatpush.msra.mxu0 0.0
  %407 = vmatpush.msra.mxu0 0.0
  %408 = vmatpush.msra.mxu0 %v57
  %409 = vmatpush.msra.mxu0 %v56
  %410 = vmatpush.msra.mxu0 %v55
  %411 = vmatpush.msra.mxu0 %v54
  %412 = vmatmul.f32.gmra.mxu0 %v368
  %v413 = vpop.f32.mrf.mxu0
  %v414 = vadd.f32 0.0, %v413
  %415 = vmatmul.f32.gmra.mxu0 %v371
  %v416 = vpop.f32.mrf.mxu0
  %v417 = vadd.f32 0.0, %v416
  %418 = vdwg.mxu0
  %s419 = scalar_lea.vmem %s2, 96
  %v420 = vld [vmem:[%s419] sm:$0xff]
  %v421 = vld [vmem:[%s419 + $0x8] sm:$0xff]
  %v422 = vld [vmem:[%s419 + $0x10] sm:$0xff]
  %v423 = vld [vmem:[%s419 + $0x18] sm:$0xff]
  %v425 = vsel %vm60, %v391, 0
  %v428 = vsel %vm60, %v394, 0
  %v431 = vsel %vm60, %v414, 0
  %v434 = vsel %vm60, %v417, 0
  %436 = vmatpush.msra.mxu0 0.0
  %437 = vmatpush.msra.mxu0 0.0
  %438 = vmatpush.msra.mxu0 0.0
  %439 = vmatpush.msra.mxu0 0.0
  %440 = vmatpush.msra.mxu0 0.0
  %441 = vmatpush.msra.mxu0 0.0
  %442 = vmatpush.msra.mxu0 0.0
  %443 = vmatpush.msra.mxu0 0.0
  %444 = vmatpush.msra.mxu0 0.0
  %445 = vmatpush.msra.mxu0 0.0
  %446 = vmatpush.msra.mxu0 0.0
  %447 = vmatpush.msra.mxu0 0.0
  %448 = vmatpush.msra.mxu0 %v423
  %449 = vmatpush.msra.mxu0 %v422
  %450 = vmatpush.msra.mxu0 %v421
  %451 = vmatpush.msra.mxu0 %v420
  %452 = vmatmul.f32.gmra.mxu0 %v425
  %v453 = vpop.f32.mrf.mxu0
  %v454 = vadd.f32 0.0, %v453
  %455 = vmatmul.f32.gmra.mxu0 %v428
  %v456 = vpop.f32.mrf.mxu0
  %v457 = vadd.f32 0.0, %v456
  %458 = vmatmul.f32.gmra.mxu0 %v431
  %v459 = vpop.f32.mrf.mxu0
  %v460 = vadd.f32 0.0, %v459
  %461 = vmatmul.f32.gmra.mxu0 %v434
  %v462 = vpop.f32.mrf.mxu0
  %v463 = vadd.f32 0.0, %v462
  %464 = vdwg.mxu0
  %v465 = vadd.f32 %v360, %v454
  %v466 = vadd.f32 %v361, %v457
  %v467 = vadd.f32 %v362, %v460
  %v468 = vadd.f32 %v363, %v463
  %vm469 = vcmp.ge.f32.partialorder %v465, 0.0
  %vm470 = vcmp.ge.f32.partialorder %v466, 0.0
  %vm471 = vcmp.ge.f32.partialorder %v467, 0.0
  %vm472 = vcmp.ge.f32.partialorder %v468, 0.0
  %v473 = vmul.f32 %v465, 0.2
  %v474 = vmul.f32 %v466, 0.2
  %v475 = vmul.f32 %v467, 0.2
  %v476 = vmul.f32 %v468, 0.2
  %v477 = vsel %vm469, %v465, %v473
  %v478 = vsel %vm470, %v466, %v474
  %v479 = vsel %vm471, %v467, %v475
  %v480 = vsel %vm472, %v468, %v476
  %v481 = vld [vmem:[%s3] sm:$0xff]
  %vm482 = vcmask 130048
  %v484 = vsel %vm482, %v481, 0
  %486 = vmatpush.msra.mxu0 0.0
  %487 = vmatpush.msra.mxu0 0.0
  %488 = vmatpush.msra.mxu0 0.0
  %489 = vmatpush.msra.mxu0 0.0
  %490 = vmatpush.msra.mxu0 0.0
  %491 = vmatpush.msra.mxu0 0.0
  %492 = vmatpush.msra.mxu0 0.0
  %493 = vmatpush.msra.mxu0 0.0
  %494 = vmatpush.msra.mxu0 0.0
  %495 = vmatpush.msra.mxu0 0.0
  %496 = vmatpush.msra.mxu0 0.0
  %497 = vmatpush.msra.mxu0 0.0
  %498 = vmatpush.msra.mxu0 0.0
  %499 = vmatpush.msra.mxu0 0.0
  %500 = vmatpush.msra.mxu0 %v478
  %501 = vmatpush.msra.mxu0 %v477
  %502 = vmatmul.f32.gmra.mxu0 %v484
  %v503 = vpop.f32.mrf.mxu0
  %v504 = vadd.f32 0.0, %v503
  %505 = vdwg.mxu0
  %506 = vmatpush.msra.mxu0 0.0
  %507 = vmatpush.msra.mxu0 0.0
  %508 = vmatpush.msra.mxu0 0.0
  %509 = vmatpush.msra.mxu0 0.0
  %510 = vmatpush.msra.mxu0 0.0
  %511 = vmatpush.msra.mxu0 0.0
  %512 = vmatpush.msra.mxu0 0.0
  %513 = vmatpush.msra.mxu0 0.0
  %514 = vmatpush.msra.mxu0 0.0
  %515 = vmatpush.msra.mxu0 0.0
  %516 = vmatpush.msra.mxu0 0.0
  %517 = vmatpush.msra.mxu0 0.0
  %518 = vmatpush.msra.mxu0 0.0
  %519 = vmatpush.msra.mxu0 0.0
  %520 = vmatpush.msra.mxu0 %v480
  %521 = vmatpush.msra.mxu0 %v479
  %522 = vmatmul.f32.gmra.mxu0 %v484
  %v523 = vpop.f32.mrf.mxu0
  %v524 = vadd.f32 0.0, %v523
  %525 = vdwg.mxu0
  %v526 = vld [vmem:[%s4] sm:$0xff]
  %v527 = vld [vmem:[%s4 + $0x8] sm:$0xff]
  %v528 = vld [vmem:[%s4 + $0x10] sm:$0xff]
  %v529 = vld [vmem:[%s4 + $0x18] sm:$0xff]
  %v530 = vld [vmem:[%s4 + $0x20] sm:$0xff]
  %v531 = vld [vmem:[%s4 + $0x28] sm:$0xff]
  %v532 = vld [vmem:[%s4 + $0x30] sm:$0xff]
  %v533 = vld [vmem:[%s4 + $0x38] sm:$0xff]
  %v534 = vld [vmem:[%s4 + $0x40] sm:$0xff]
  %v535 = vld [vmem:[%s4 + $0x48] sm:$0xff]
  %v536 = vld [vmem:[%s4 + $0x50] sm:$0xff]
  %v537 = vld [vmem:[%s4 + $0x58] sm:$0xff]
  %v538 = vld [vmem:[%s4 + $0x60] sm:$0xff]
  %v539 = vld [vmem:[%s4 + $0x68] sm:$0xff]
  %v540 = vld [vmem:[%s4 + $0x70] sm:$0xff]
  %v541 = vld [vmem:[%s4 + $0x78] sm:$0xff]
  %s542 = scalar_lea.vmem %s3, 8
  %v543 = vld [vmem:[%s542] sm:$0xff]
  %v545 = vsel %vm482, %v543, 0
  %547 = vmatpush.msra.mxu0 0.0
  %548 = vmatpush.msra.mxu0 0.0
  %549 = vmatpush.msra.mxu0 0.0
  %550 = vmatpush.msra.mxu0 0.0
  %551 = vmatpush.msra.mxu0 0.0
  %552 = vmatpush.msra.mxu0 0.0
  %553 = vmatpush.msra.mxu0 0.0
  %554 = vmatpush.msra.mxu0 0.0
  %555 = vmatpush.msra.mxu0 0.0
  %556 = vmatpush.msra.mxu0 0.0
  %557 = vmatpush.msra.mxu0 0.0
  %558 = vmatpush.msra.mxu0 0.0
  %559 = vmatpush.msra.mxu0 0.0
  %560 = vmatpush.msra.mxu0 0.0
  %561 = vmatpush.msra.mxu0 %v478
  %562 = vmatpush.msra.mxu0 %v477
  %563 = vmatmul.f32.gmra.mxu0 %v545
  %v564 = vpop.f32.mrf.mxu0
  %v565 = vadd.f32 0.0, %v564
  %566 = vdwg.mxu0
  %567 = vmatpush.msra.mxu0 0.0
  %568 = vmatpush.msra.mxu0 0.0
  %569 = vmatpush.msra.mxu0 0.0
  %570 = vmatpush.msra.mxu0 0.0
  %571 = vmatpush.msra.mxu0 0.0
  %572 = vmatpush.msra.mxu0 0.0
  %573 = vmatpush.msra.mxu0 0.0
  %574 = vmatpush.msra.mxu0 0.0
  %575 = vmatpush.msra.mxu0 0.0
  %576 = vmatpush.msra.mxu0 0.0
  %577 = vmatpush.msra.mxu0 0.0
  %578 = vmatpush.msra.mxu0 0.0
  %579 = vmatpush.msra.mxu0 0.0
  %580 = vmatpush.msra.mxu0 0.0
  %581 = vmatpush.msra.mxu0 %v480
  %582 = vmatpush.msra.mxu0 %v479
  %583 = vmatmul.f32.gmra.mxu0 %v545
  %v584 = vpop.f32.mrf.mxu0
  %v585 = vadd.f32 0.0, %v584
  %586 = vdwg.mxu0
  %s587 = scalar_lea.vmem %s4, 128
  %v588 = vld [vmem:[%s587] sm:$0xff]
  %v589 = vld [vmem:[%s587 + $0x8] sm:$0xff]
  %v590 = vld [vmem:[%s587 + $0x10] sm:$0xff]
  %v591 = vld [vmem:[%s587 + $0x18] sm:$0xff]
  %v592 = vld [vmem:[%s587 + $0x20] sm:$0xff]
  %v593 = vld [vmem:[%s587 + $0x28] sm:$0xff]
  %v594 = vld [vmem:[%s587 + $0x30] sm:$0xff]
  %v595 = vld [vmem:[%s587 + $0x38] sm:$0xff]
  %v596 = vld [vmem:[%s587 + $0x40] sm:$0xff]
  %v597 = vld [vmem:[%s587 + $0x48] sm:$0xff]
  %v598 = vld [vmem:[%s587 + $0x50] sm:$0xff]
  %v599 = vld [vmem:[%s587 + $0x58] sm:$0xff]
  %v600 = vld [vmem:[%s587 + $0x60] sm:$0xff]
  %v601 = vld [vmem:[%s587 + $0x68] sm:$0xff]
  %v602 = vld [vmem:[%s587 + $0x70] sm:$0xff]
  %v603 = vld [vmem:[%s587 + $0x78] sm:$0xff]
  %604 = vmatpush.msra.mxu0 %v603
  %605 = vmatpush.msra.mxu0 %v602
  %606 = vmatpush.msra.mxu0 %v601
  %607 = vmatpush.msra.mxu0 %v600
  %608 = vmatpush.msra.mxu0 %v599
  %609 = vmatpush.msra.mxu0 %v598
  %610 = vmatpush.msra.mxu0 %v597
  %611 = vmatpush.msra.mxu0 %v596
  %612 = vmatpush.msra.mxu0 %v595
  %613 = vmatpush.msra.mxu0 %v594
  %614 = vmatpush.msra.mxu0 %v593
  %615 = vmatpush.msra.mxu0 %v592
  %616 = vmatpush.msra.mxu0 %v591
  %617 = vmatpush.msra.mxu0 %v590
  %618 = vmatpush.msra.mxu0 %v589
  %619 = vmatpush.msra.mxu0 %v588
  %620 = vmatmul.f32.gmra.mxu0 %v565
  %v621 = vpop.f32.mrf.mxu0
  %v622 = vadd.f32 0.0, %v621
  %623 = vmatmul.f32.gmra.mxu0 %v585
  %v624 = vpop.f32.mrf.mxu0
  %v625 = vadd.f32 0.0, %v624
  %626 = vdwg.mxu0
  %627 = vmatpush.msra.mxu0 %v541
  %628 = vmatpush.msra.mxu0 %v540
  %629 = vmatpush.msra.mxu0 %v539
  %630 = vmatpush.msra.mxu0 %v538
  %631 = vmatpush.msra.mxu0 %v537
  %632 = vmatpush.msra.mxu0 %v536
  %633 = vmatpush.msra.mxu0 %v535
  %634 = vmatpush.msra.mxu0 %v534
  %635 = vmatpush.msra.mxu0 %v533
  %636 = vmatpush.msra.mxu0 %v532
  %637 = vmatpush.msra.mxu0 %v531
  %638 = vmatpush.msra.mxu0 %v530
  %639 = vmatpush.msra.mxu0 %v529
  %640 = vmatpush.msra.mxu0 %v528
  %641 = vmatpush.msra.mxu0 %v527
  %642 = vmatpush.msra.mxu0 %v526
  %643 = vmatmul.f32.gmra.mxu0 %v504
  %v644 = vpop.f32.mrf.mxu0
  %v645 = vadd.f32 %v622, %v644
  %646 = vmatmul.f32.gmra.mxu0 %v524
  %v647 = vpop.f32.mrf.mxu0
  %v648 = vadd.f32 %v625, %v647
  %649 = vdwg.mxu0
  %s650 = scalar_lea.vmem %s3, 16
  %v651 = vld [vmem:[%s650] sm:$0xff]
  %v653 = vsel %vm482, %v651, 0
  %655 = vmatpush.msra.mxu0 0.0
  %656 = vmatpush.msra.mxu0 0.0
  %657 = vmatpush.msra.mxu0 0.0
  %658 = vmatpush.msra.mxu0 0.0
  %659 = vmatpush.msra.mxu0 0.0
  %660 = vmatpush.msra.mxu0 0.0
  %661 = vmatpush.msra.mxu0 0.0
  %662 = vmatpush.msra.mxu0 0.0
  %663 = vmatpush.msra.mxu0 0.0
  %664 = vmatpush.msra.mxu0 0.0
  %665 = vmatpush.msra.mxu0 0.0
  %666 = vmatpush.msra.mxu0 0.0
  %667 = vmatpush.msra.mxu0 0.0
  %668 = vmatpush.msra.mxu0 0.0
  %669 = vmatpush.msra.mxu0 %v478
  %670 = vmatpush.msra.mxu0 %v477
  %671 = vmatmul.f32.gmra.mxu0 %v653
  %v672 = vpop.f32.mrf.mxu0
  %v673 = vadd.f32 0.0, %v672
  %674 = vdwg.mxu0
  %675 = vmatpush.msra.mxu0 0.0
  %676 = vmatpush.msra.mxu0 0.0
  %677 = vmatpush.msra.mxu0 0.0
  %678 = vmatpush.msra.mxu0 0.0
  %679 = vmatpush.msra.mxu0 0.0
  %680 = vmatpush.msra.mxu0 0.0
  %681 = vmatpush.msra.mxu0 0.0
  %682 = vmatpush.msra.mxu0 0.0
  %683 = vmatpush.msra.mxu0 0.0
  %684 = vmatpush.msra.mxu0 0.0
  %685 = vmatpush.msra.mxu0 0.0
  %686 = vmatpush.msra.mxu0 0.0
  %687 = vmatpush.msra.mxu0 0.0
  %688 = vmatpush.msra.mxu0 0.0
  %689 = vmatpush.msra.mxu0 %v480
  %690 = vmatpush.msra.mxu0 %v479
  %691 = vmatmul.f32.gmra.mxu0 %v653
  %v692 = vpop.f32.mrf.mxu0
  %v693 = vadd.f32 0.0, %v692
  %694 = vdwg.mxu0
  %s695 = scalar_lea.vmem %s4, 256
  %v696 = vld [vmem:[%s695] sm:$0xff]
  %v697 = vld [vmem:[%s695 + $0x8] sm:$0xff]
  %v698 = vld [vmem:[%s695 + $0x10] sm:$0xff]
  %v699 = vld [vmem:[%s695 + $0x18] sm:$0xff]
  %v700 = vld [vmem:[%s695 + $0x20] sm:$0xff]
  %v701 = vld [vmem:[%s695 + $0x28] sm:$0xff]
  %v702 = vld [vmem:[%s695 + $0x30] sm:$0xff]
  %v703 = vld [vmem:[%s695 + $0x38] sm:$0xff]
  %v704 = vld [vmem:[%s695 + $0x40] sm:$0xff]
  %v705 = vld [vmem:[%s695 + $0x48] sm:$0xff]
  %v706 = vld [vmem:[%s695 + $0x50] sm:$0xff]
  %v707 = vld [vmem:[%s695 + $0x58] sm:$0xff]
  %v708 = vld [vmem:[%s695 + $0x60] sm:$0xff]
  %v709 = vld [vmem:[%s695 + $0x68] sm:$0xff]
  %v710 = vld [vmem:[%s695 + $0x70] sm:$0xff]
  %v711 = vld [vmem:[%s695 + $0x78] sm:$0xff]
  %712 = vmatpush.msra.mxu0 %v711
  %713 = vmatpush.msra.mxu0 %v710
  %714 = vmatpush.msra.mxu0 %v709
  %715 = vmatpush.msra.mxu0 %v708
  %716 = vmatpush.msra.mxu0 %v707
  %717 = vmatpush.msra.mxu0 %v706
  %718 = vmatpush.msra.mxu0 %v705
  %719 = vmatpush.msra.mxu0 %v704
  %720 = vmatpush.msra.mxu0 %v703
  %721 = vmatpush.msra.mxu0 %v702
  %722 = vmatpush.msra.mxu0 %v701
  %723 = vmatpush.msra.mxu0 %v700
  %724 = vmatpush.msra.mxu0 %v699
  %725 = vmatpush.msra.mxu0 %v698
  %726 = vmatpush.msra.mxu0 %v697
  %727 = vmatpush.msra.mxu0 %v696
  %728 = vmatmul.f32.gmra.mxu0 %v673
  %v729 = vpop.f32.mrf.mxu0
  %v730 = vadd.f32 0.0, %v729
  %731 = vmatmul.f32.gmra.mxu0 %v693
  %v732 = vpop.f32.mrf.mxu0
  %v733 = vadd.f32 0.0, %v732
  %734 = vdwg.mxu0
  %v735 = vadd.f32 %v645, %v730
  %v736 = vadd.f32 %v648, %v733
  %s737 = scalar_lea.vmem %s3, 24
  %v738 = vld [vmem:[%s737] sm:$0xff]
  %v740 = vsel %vm482, %v738, 0
  %742 = vmatpush.msra.mxu0 0.0
  %743 = vmatpush.msra.mxu0 0.0
  %744 = vmatpush.msra.mxu0 0.0
  %745 = vmatpush.msra.mxu0 0.0
  %746 = vmatpush.msra.mxu0 0.0
  %747 = vmatpush.msra.mxu0 0.0
  %748 = vmatpush.msra.mxu0 0.0
  %749 = vmatpush.msra.mxu0 0.0
  %750 = vmatpush.msra.mxu0 0.0
  %751 = vmatpush.msra.mxu0 0.0
  %752 = vmatpush.msra.mxu0 0.0
  %753 = vmatpush.msra.mxu0 0.0
  %754 = vmatpush.msra.mxu0 0.0
  %755 = vmatpush.msra.mxu0 0.0
  %756 = vmatpush.msra.mxu0 %v478
  %757 = vmatpush.msra.mxu0 %v477
  %758 = vmatmul.f32.gmra.mxu0 %v740
  %v759 = vpop.f32.mrf.mxu0
  %v760 = vadd.f32 0.0, %v759
  %761 = vdwg.mxu0
  %762 = vmatpush.msra.mxu0 0.0
  %763 = vmatpush.msra.mxu0 0.0
  %764 = vmatpush.msra.mxu0 0.0
  %765 = vmatpush.msra.mxu0 0.0
  %766 = vmatpush.msra.mxu0 0.0
  %767 = vmatpush.msra.mxu0 0.0
  %768 = vmatpush.msra.mxu0 0.0
  %769 = vmatpush.msra.mxu0 0.0
  %770 = vmatpush.msra.mxu0 0.0
  %771 = vmatpush.msra.mxu0 0.0
  %772 = vmatpush.msra.mxu0 0.0
  %773 = vmatpush.msra.mxu0 0.0
  %774 = vmatpush.msra.mxu0 0.0
  %775 = vmatpush.msra.mxu0 0.0
  %776 = vmatpush.msra.mxu0 %v480
  %777 = vmatpush.msra.mxu0 %v479
  %778 = vmatmul.f32.gmra.mxu0 %v740
  %v779 = vpop.f32.mrf.mxu0
  %v780 = vadd.f32 0.0, %v779
  %781 = vdwg.mxu0
  %s782 = scalar_lea.vmem %s4, 384
  %v783 = vld [vmem:[%s782] sm:$0xff]
  %v784 = vld [vmem:[%s782 + $0x8] sm:$0xff]
  %v785 = vld [vmem:[%s782 + $0x10] sm:$0xff]
  %v786 = vld [vmem:[%s782 + $0x18] sm:$0xff]
  %v787 = vld [vmem:[%s782 + $0x20] sm:$0xff]
  %v788 = vld [vmem:[%s782 + $0x28] sm:$0xff]
  %v789 = vld [vmem:[%s782 + $0x30] sm:$0xff]
  %v790 = vld [vmem:[%s782 + $0x38] sm:$0xff]
  %v791 = vld [vmem:[%s782 + $0x40] sm:$0xff]
  %v792 = vld [vmem:[%s782 + $0x48] sm:$0xff]
  %v793 = vld [vmem:[%s782 + $0x50] sm:$0xff]
  %v794 = vld [vmem:[%s782 + $0x58] sm:$0xff]
  %v795 = vld [vmem:[%s782 + $0x60] sm:$0xff]
  %v796 = vld [vmem:[%s782 + $0x68] sm:$0xff]
  %v797 = vld [vmem:[%s782 + $0x70] sm:$0xff]
  %v798 = vld [vmem:[%s782 + $0x78] sm:$0xff]
  %799 = vmatpush.msra.mxu0 %v798
  %800 = vmatpush.msra.mxu0 %v797
  %801 = vmatpush.msra.mxu0 %v796
  %802 = vmatpush.msra.mxu0 %v795
  %803 = vmatpush.msra.mxu0 %v794
  %804 = vmatpush.msra.mxu0 %v793
  %805 = vmatpush.msra.mxu0 %v792
  %806 = vmatpush.msra.mxu0 %v791
  %807 = vmatpush.msra.mxu0 %v790
  %808 = vmatpush.msra.mxu0 %v789
  %809 = vmatpush.msra.mxu0 %v788
  %810 = vmatpush.msra.mxu0 %v787
  %811 = vmatpush.msra.mxu0 %v786
  %812 = vmatpush.msra.mxu0 %v785
  %813 = vmatpush.msra.mxu0 %v784
  %814 = vmatpush.msra.mxu0 %v783
  %815 = vmatmul.f32.gmra.mxu0 %v760
  %v816 = vpop.f32.mrf.mxu0
  %v817 = vadd.f32 0.0, %v816
  %818 = vmatmul.f32.gmra.mxu0 %v780
  %v819 = vpop.f32.mrf.mxu0
  %v820 = vadd.f32 0.0, %v819
  %821 = vdwg.mxu0
  %v822 = vadd.f32 %v735, %v817
  %v823 = vadd.f32 %v736, %v820
  %v824 = vld [vmem:[%s5] sm:$0x1]
  %v825 = vld [vmem:[%s6] sm:$0x1]
  %v826 = vld [vmem:[%s7] sm:$0xff]
  %v827 = vld [vmem:[%s7 + $0x8] sm:$0xff]
  %v828 = vld [vmem:[%s7 + $0x10] sm:$0xff]
  %v829 = vld [vmem:[%s7 + $0x18] sm:$0xff]
  %v830 = vld [vmem:[%s7 + $0x20] sm:$0xff]
  %v831 = vld [vmem:[%s7 + $0x28] sm:$0xff]
  %v832 = vld [vmem:[%s7 + $0x30] sm:$0xff]
  %v833 = vld [vmem:[%s7 + $0x38] sm:$0xff]
  %v834 = vld [vmem:[%s7 + $0x40] sm:$0xff]
  %v835 = vld [vmem:[%s7 + $0x48] sm:$0xff]
  %v836 = vld [vmem:[%s7 + $0x50] sm:$0xff]
  %v837 = vld [vmem:[%s7 + $0x58] sm:$0xff]
  %v838 = vld [vmem:[%s7 + $0x60] sm:$0xff]
  %v839 = vld [vmem:[%s7 + $0x68] sm:$0xff]
  %v840 = vld [vmem:[%s7 + $0x70] sm:$0xff]
  %v841 = vld [vmem:[%s7 + $0x78] sm:$0xff]
  %v842 = vadd.f32 %v822, %v823
  %v843 = vrot.slane %v842, 4
  %v844 = vadd.f32 %v842, %v843
  %v845 = vrot.slane %v844, 2
  %v846 = vadd.f32 %v844, %v845
  %v847 = vrot.slane %v846, 1
  %v848 = vadd.f32 %v846, %v847
  %v849 = vmul.f32 %v822, %v822
  %v850 = vmul.f32 %v823, %v823
  %v851 = vadd.f32 %v849, %v850
  %v852 = vrot.slane %v851, 4
  %v853 = vadd.f32 %v851, %v852
  %v854 = vrot.slane %v853, 2
  %v855 = vadd.f32 %v853, %v854
  %v856 = vrot.slane %v855, 1
  %v857 = vadd.f32 %v855, %v856
  %858 = vmatpush.msra.mxu0 %v841
  %859 = vmatpush.msra.mxu0 %v840
  %860 = vmatpush.msra.mxu0 %v839
  %861 = vmatpush.msra.mxu0 %v838
  %862 = vmatpush.msra.mxu0 %v837
  %863 = vmatpush.msra.mxu0 %v836
  %864 = vmatpush.msra.mxu0 %v835
  %865 = vmatpush.msra.mxu0 %v834
  %866 = vmatpush.msra.mxu0 %v833
  %867 = vmatpush.msra.mxu0 %v832
  %868 = vmatpush.msra.mxu0 %v831
  %869 = vmatpush.msra.mxu0 %v830
  %870 = vmatpush.msra.mxu0 %v829
  %871 = vmatpush.msra.mxu0 %v828
  %872 = vmatpush.msra.mxu0 %v827
  %873 = vmatpush.msra.mxu0 %v826
  %874 = vmatmul.f32.gmra.mxu0 %v848
  %v875 = vpop.f32.mrf.mxu0
  %v876 = vadd.f32 0.0, %v875
  %877 = vdwg.mxu0
  %v878 = vmul.f32 %v876, 0.0078125
  %879 = vmatpush.msra.mxu0 %v841
  %880 = vmatpush.msra.mxu0 %v840
  %881 = vmatpush.msra.mxu0 %v839
  %882 = vmatpush.msra.mxu0 %v838
  %883 = vmatpush.msra.mxu0 %v837
  %884 = vmatpush.msra.mxu0 %v836
  %885 = vmatpush.msra.mxu0 %v835
  %886 = vmatpush.msra.mxu0 %v834
  %887 = vmatpush.msra.mxu0 %v833
  %888 = vmatpush.msra.mxu0 %v832
  %889 = vmatpush.msra.mxu0 %v831
  %890 = vmatpush.msra.mxu0 %v830
  %891 = vmatpush.msra.mxu0 %v829
  %892 = vmatpush.msra.mxu0 %v828
  %893 = vmatpush.msra.mxu0 %v827
  %894 = vmatpush.msra.mxu0 %v826
  %895 = vmatmul.f32.gmra.mxu0 %v857
  %v896 = vpop.f32.mrf.mxu0
  %v897 = vadd.f32 0.0, %v896
  %898 = vdwg.mxu0
  %v899 = vmul.f32 %v897, 0.0078125
  %v900 = vmul.f32 %v878, %v878
  %v901 = vsub.f32 %v899, %v900
  %v902 = vadd.f32 %v901, 1e-05
  %v903 = vrsqrt.pop %v902
  %v904 = vmul.f32 %v903, %v902
  %v905 = vmul.f32 %v904, %v903
  %v906 = vmul.f32 0.5, %v905
  %v907 = vsub.f32 1.5, %v906
  %v908 = vmul.f32 %v903, %v907
  %vm909 = vweird.f32 %v902
  %vm910 = vweird.f32 %v903
  %vm911 = vmor %vm909, %vm910
  %v912 = vsel %vm911, %v903, %v908
  %v913 = vmul.f32 %v912, %v824
  %v914 = vperm.slane %v878, 0
  %v915 = vsub.f32 %v822, %v914
  %v916 = vsub.f32 %v823, %v914
  %v917 = vperm.slane %v913, 0
  %v918 = vmul.f32 %v915, %v917
  %v919 = vmul.f32 %v916, %v917
  %v921 = vperm.slane %v825, 0
  %v923 = vadd.f32 %v918, %v921
  %v924 = vadd.f32 %v919, %v921
  %vm925 = vcmp.ge.f32.partialorder %v923, 0.0
  %vm926 = vcmp.ge.f32.partialorder %v924, 0.0
  %v927 = vmul.f32 %v923, 0.2
  %v928 = vmul.f32 %v924, 0.2
  %v929 = vsel %vm925, %v923, %v927
  %v930 = vsel %vm926, %v924, %v928
  %v931 = vld [vmem:[%s8] sm:$0xf]
  %vm932 = vcmask 64512
  %v934 = vsel %vm932, %v931, 0
  %936 = vmatpush.msra.mxu0 0.0
  %937 = vmatpush.msra.mxu0 0.0
  %938 = vmatpush.msra.mxu0 0.0
  %939 = vmatpush.msra.mxu0 0.0
  %940 = vmatpush.msra.mxu0 0.0
  %941 = vmatpush.msra.mxu0 0.0
  %942 = vmatpush.msra.mxu0 0.0
  %943 = vmatpush.msra.mxu0 0.0
  %944 = vmatpush.msra.mxu0 0.0
  %945 = vmatpush.msra.mxu0 0.0
  %946 = vmatpush.msra.mxu0 0.0
  %947 = vmatpush.msra.mxu0 0.0
  %948 = vmatpush.msra.mxu0 0.0
  %949 = vmatpush.msra.mxu0 0.0
  %950 = vmatpush.msra.mxu0 0.0
  %951 = vmatpush.msra.mxu0 %v929
  %952 = vmatmul.f32.gmra.mxu0 %v934
  %v953 = vpop.f32.mrf.mxu0
  %v954 = vadd.f32 0.0, %v953
  %955 = vdwg.mxu0
  %956 = vmatpush.msra.mxu0 0.0
  %957 = vmatpush.msra.mxu0 0.0
  %958 = vmatpush.msra.mxu0 0.0
  %959 = vmatpush.msra.mxu0 0.0
  %960 = vmatpush.msra.mxu0 0.0
  %961 = vmatpush.msra.mxu0 0.0
  %962 = vmatpush.msra.mxu0 0.0
  %963 = vmatpush.msra.mxu0 0.0
  %964 = vmatpush.msra.mxu0 0.0
  %965 = vmatpush.msra.mxu0 0.0
  %966 = vmatpush.msra.mxu0 0.0
  %967 = vmatpush.msra.mxu0 0.0
  %968 = vmatpush.msra.mxu0 0.0
  %969 = vmatpush.msra.mxu0 0.0
  %970 = vmatpush.msra.mxu0 0.0
  %971 = vmatpush.msra.mxu0 %v930
  %972 = vmatmul.f32.gmra.mxu0 %v934
  %v973 = vpop.f32.mrf.mxu0
  %v974 = vadd.f32 0.0, %v973
  %975 = vdwg.mxu0
  %v977 = vrot.slane %v974, 4
  %vm979 = vcmask 1043456
  %v980 = vsel %vm979, %v954, %v977
  %v981 = vld [vmem:[%s9] sm:$0xff]
  %v982 = vld [vmem:[%s9 + $0x8] sm:$0xff]
  %v983 = vld [vmem:[%s9 + $0x10] sm:$0xff]
  %v984 = vld [vmem:[%s9 + $0x18] sm:$0xff]
  %v985 = vld [vmem:[%s9 + $0x20] sm:$0xff]
  %v986 = vld [vmem:[%s9 + $0x28] sm:$0xff]
  %v987 = vld [vmem:[%s9 + $0x30] sm:$0xff]
  %v988 = vld [vmem:[%s9 + $0x38] sm:$0xff]
  %v989 = vld [vmem:[%s9 + $0x40] sm:$0xff]
  %v990 = vld [vmem:[%s9 + $0x48] sm:$0xff]
  %v991 = vld [vmem:[%s9 + $0x50] sm:$0xff]
  %v992 = vld [vmem:[%s9 + $0x58] sm:$0xff]
  %v993 = vld [vmem:[%s9 + $0x60] sm:$0xff]
  %v994 = vld [vmem:[%s9 + $0x68] sm:$0xff]
  %v995 = vld [vmem:[%s9 + $0x70] sm:$0xff]
  %v996 = vld [vmem:[%s9 + $0x78] sm:$0xff]
  %s997 = scalar_lea.vmem %s8, 4
  %v998 = vld [vmem:[%s997] sm:$0xf]
  %v1000 = vsel %vm932, %v998, 0
  %1002 = vmatpush.msra.mxu0 0.0
  %1003 = vmatpush.msra.mxu0 0.0
  %1004 = vmatpush.msra.mxu0 0.0
  %1005 = vmatpush.msra.mxu0 0.0
  %1006 = vmatpush.msra.mxu0 0.0
  %1007 = vmatpush.msra.mxu0 0.0
  %1008 = vmatpush.msra.mxu0 0.0
  %1009 = vmatpush.msra.mxu0 0.0
  %1010 = vmatpush.msra.mxu0 0.0
  %1011 = vmatpush.msra.mxu0 0.0
  %1012 = vmatpush.msra.mxu0 0.0
  %1013 = vmatpush.msra.mxu0 0.0
  %1014 = vmatpush.msra.mxu0 0.0
  %1015 = vmatpush.msra.mxu0 0.0
  %1016 = vmatpush.msra.mxu0 0.0
  %1017 = vmatpush.msra.mxu0 %v929
  %1018 = vmatmul.f32.gmra.mxu0 %v1000
  %v1019 = vpop.f32.mrf.mxu0
  %v1020 = vadd.f32 0.0, %v1019
  %1021 = vdwg.mxu0
  %1022 = vmatpush.msra.mxu0 0.0
  %1023 = vmatpush.msra.mxu0 0.0
  %1024 = vmatpush.msra.mxu0 0.0
  %1025 = vmatpush.msra.mxu0 0.0
  %1026 = vmatpush.msra.mxu0 0.0
  %1027 = vmatpush.msra.mxu0 0.0
  %1028 = vmatpush.msra.mxu0 0.0
  %1029 = vmatpush.msra.mxu0 0.0
  %1030 = vmatpush.msra.mxu0 0.0
  %1031 = vmatpush.msra.mxu0 0.0
  %1032 = vmatpush.msra.mxu0 0.0
  %1033 = vmatpush.msra.mxu0 0.0
  %1034 = vmatpush.msra.mxu0 0.0
  %1035 = vmatpush.msra.mxu0 0.0
  %1036 = vmatpush.msra.mxu0 0.0
  %1037 = vmatpush.msra.mxu0 %v930
  %1038 = vmatmul.f32.gmra.mxu0 %v1000
  %v1039 = vpop.f32.mrf.mxu0
  %v1040 = vadd.f32 0.0, %v1039
  %1041 = vdwg.mxu0
  %v1043 = vrot.slane %v1040, 4
  %v1045 = vsel %vm979, %v1020, %v1043
  %s1046 = scalar_lea.vmem %s9, 128
  %v1047 = vld [vmem:[%s1046] sm:$0xff]
  %v1048 = vld [vmem:[%s1046 + $0x8] sm:$0xff]
  %v1049 = vld [vmem:[%s1046 + $0x10] sm:$0xff]
  %v1050 = vld [vmem:[%s1046 + $0x18] sm:$0xff]
  %v1051 = vld [vmem:[%s1046 + $0x20] sm:$0xff]
  %v1052 = vld [vmem:[%s1046 + $0x28] sm:$0xff]
  %v1053 = vld [vmem:[%s1046 + $0x30] sm:$0xff]
  %v1054 = vld [vmem:[%s1046 + $0x38] sm:$0xff]
  %v1055 = vld [vmem:[%s1046 + $0x40] sm:$0xff]
  %v1056 = vld [vmem:[%s1046 + $0x48] sm:$0xff]
  %v1057 = vld [vmem:[%s1046 + $0x50] sm:$0xff]
  %v1058 = vld [vmem:[%s1046 + $0x58] sm:$0xff]
  %v1059 = vld [vmem:[%s1046 + $0x60] sm:$0xff]
  %v1060 = vld [vmem:[%s1046 + $0x68] sm:$0xff]
  %v1061 = vld [vmem:[%s1046 + $0x70] sm:$0xff]
  %v1062 = vld [vmem:[%s1046 + $0x78] sm:$0xff]
  %1063 = vmatpush.msra.mxu0 %v1062
  %1064 = vmatpush.msra.mxu0 %v1061
  %1065 = vmatpush.msra.mxu0 %v1060
  %1066 = vmatpush.msra.mxu0 %v1059
  %1067 = vmatpush.msra.mxu0 %v1058
  %1068 = vmatpush.msra.mxu0 %v1057
  %1069 = vmatpush.msra.mxu0 %v1056
  %1070 = vmatpush.msra.mxu0 %v1055
  %1071 = vmatpush.msra.mxu0 %v1054
  %1072 = vmatpush.msra.mxu0 %v1053
  %1073 = vmatpush.msra.mxu0 %v1052
  %1074 = vmatpush.msra.mxu0 %v1051
  %1075 = vmatpush.msra.mxu0 %v1050
  %1076 = vmatpush.msra.mxu0 %v1049
  %1077 = vmatpush.msra.mxu0 %v1048
  %1078 = vmatpush.msra.mxu0 %v1047
  %1079 = vmatmul.f32.gmra.mxu0 %v1045
  %v1080 = vpop.f32.mrf.mxu0
  %v1081 = vadd.f32 0.0, %v1080
  %1082 = vdwg.mxu0
  %1083 = vmatpush.msra.mxu0 %v996
  %1084 = vmatpush.msra.mxu0 %v995
  %1085 = vmatpush.msra.mxu0 %v994
  %1086 = vmatpush.msra.mxu0 %v993
  %1087 = vmatpush.msra.mxu0 %v992
  %1088 = vmatpush.msra.mxu0 %v991
  %1089 = vmatpush.msra.mxu0 %v990
  %1090 = vmatpush.msra.mxu0 %v989
  %1091 = vmatpush.msra.mxu0 %v988
  %1092 = vmatpush.msra.mxu0 %v987
  %1093 = vmatpush.msra.mxu0 %v986
  %1094 = vmatpush.msra.mxu0 %v985
  %1095 = vmatpush.msra.mxu0 %v984
  %1096 = vmatpush.msra.mxu0 %v983
  %1097 = vmatpush.msra.mxu0 %v982
  %1098 = vmatpush.msra.mxu0 %v981
  %1099 = vmatmul.f32.gmra.mxu0 %v980
  %v1100 = vpop.f32.mrf.mxu0
  %v1101 = vadd.f32 %v1081, %v1100
  %1102 = vdwg.mxu0
  %s1103 = scalar_lea.vmem %s8, 8
  %v1104 = vld [vmem:[%s1103] sm:$0xf]
  %v1106 = vsel %vm932, %v1104, 0
  %1108 = vmatpush.msra.mxu0 0.0
  %1109 = vmatpush.msra.mxu0 0.0
  %1110 = vmatpush.msra.mxu0 0.0
  %1111 = vmatpush.msra.mxu0 0.0
  %1112 = vmatpush.msra.mxu0 0.0
  %1113 = vmatpush.msra.mxu0 0.0
  %1114 = vmatpush.msra.mxu0 0.0
  %1115 = vmatpush.msra.mxu0 0.0
  %1116 = vmatpush.msra.mxu0 0.0
  %1117 = vmatpush.msra.mxu0 0.0
  %1118 = vmatpush.msra.mxu0 0.0
  %1119 = vmatpush.msra.mxu0 0.0
  %1120 = vmatpush.msra.mxu0 0.0
  %1121 = vmatpush.msra.mxu0 0.0
  %1122 = vmatpush.msra.mxu0 0.0
  %1123 = vmatpush.msra.mxu0 %v929
  %1124 = vmatmul.f32.gmra.mxu0 %v1106
  %v1125 = vpop.f32.mrf.mxu0
  %v1126 = vadd.f32 0.0, %v1125
  %1127 = vdwg.mxu0
  %1128 = vmatpush.msra.mxu0 0.0
  %1129 = vmatpush.msra.mxu0 0.0
  %1130 = vmatpush.msra.mxu0 0.0
  %1131 = vmatpush.msra.mxu0 0.0
  %1132 = vmatpush.msra.mxu0 0.0
  %1133 = vmatpush.msra.mxu0 0.0
  %1134 = vmatpush.msra.mxu0 0.0
  %1135 = vmatpush.msra.mxu0 0.0
  %1136 = vmatpush.msra.mxu0 0.0
  %1137 = vmatpush.msra.mxu0 0.0
  %1138 = vmatpush.msra.mxu0 0.0
  %1139 = vmatpush.msra.mxu0 0.0
  %1140 = vmatpush.msra.mxu0 0.0
  %1141 = vmatpush.msra.mxu0 0.0
  %1142 = vmatpush.msra.mxu0 0.0
  %1143 = vmatpush.msra.mxu0 %v930
  %1144 = vmatmul.f32.gmra.mxu0 %v1106
  %v1145 = vpop.f32.mrf.mxu0
  %v1146 = vadd.f32 0.0, %v1145
  %1147 = vdwg.mxu0
  %v1149 = vrot.slane %v1146, 4
  %v1151 = vsel %vm979, %v1126, %v1149
  %s1152 = scalar_lea.vmem %s9, 256
  %v1153 = vld [vmem:[%s1152] sm:$0xff]
  %v1154 = vld [vmem:[%s1152 + $0x8] sm:$0xff]
  %v1155 = vld [vmem:[%s1152 + $0x10] sm:$0xff]
  %v1156 = vld [vmem:[%s1152 + $0x18] sm:$0xff]
  %v1157 = vld [vmem:[%s1152 + $0x20] sm:$0xff]
  %v1158 = vld [vmem:[%s1152 + $0x28] sm:$0xff]
  %v1159 = vld [vmem:[%s1152 + $0x30] sm:$0xff]
  %v1160 = vld [vmem:[%s1152 + $0x38] sm:$0xff]
  %v1161 = vld [vmem:[%s1152 + $0x40] sm:$0xff]
  %v1162 = vld [vmem:[%s1152 + $0x48] sm:$0xff]
  %v1163 = vld [vmem:[%s1152 + $0x50] sm:$0xff]
  %v1164 = vld [vmem:[%s1152 + $0x58] sm:$0xff]
  %v1165 = vld [vmem:[%s1152 + $0x60] sm:$0xff]
  %v1166 = vld [vmem:[%s1152 + $0x68] sm:$0xff]
  %v1167 = vld [vmem:[%s1152 + $0x70] sm:$0xff]
  %v1168 = vld [vmem:[%s1152 + $0x78] sm:$0xff]
  %1169 = vmatpush.msra.mxu0 %v1168
  %1170 = vmatpush.msra.mxu0 %v1167
  %1171 = vmatpush.msra.mxu0 %v1166
  %1172 = vmatpush.msra.mxu0 %v1165
  %1173 = vmatpush.msra.mxu0 %v1164
  %1174 = vmatpush.msra.mxu0 %v1163
  %1175 = vmatpush.msra.mxu0 %v1162
  %1176 = vmatpush.msra.mxu0 %v1161
  %1177 = vmatpush.msra.mxu0 %v1160
  %1178 = vmatpush.msra.mxu0 %v1159
  %1179 = vmatpush.msra.mxu0 %v1158
  %1180 = vmatpush.msra.mxu0 %v1157
  %1181 = vmatpush.msra.mxu0 %v1156
  %1182 = vmatpush.msra.mxu0 %v1155
  %1183 = vmatpush.msra.mxu0 %v1154
  %1184 = vmatpush.msra.mxu0 %v1153
  %1185 = vmatmul.f32.gmra.mxu0 %v1151
  %v1186 = vpop.f32.mrf.mxu0
  %v1187 = vadd.f32 0.0, %v1186
  %1188 = vdwg.mxu0
  %v1189 = vadd.f32 %v1101, %v1187
  %s1190 = scalar_lea.vmem %s8, 12
  %v1191 = vld [vmem:[%s1190] sm:$0xf]
  %v1193 = vsel %vm932, %v1191, 0
  %1195 = vmatpush.msra.mxu0 0.0
  %1196 = vmatpush.msra.mxu0 0.0
  %1197 = vmatpush.msra.mxu0 0.0
  %1198 = vmatpush.msra.mxu0 0.0
  %1199 = vmatpush.msra.mxu0 0.0
  %1200 = vmatpush.msra.mxu0 0.0
  %1201 = vmatpush.msra.mxu0 0.0
  %1202 = vmatpush.msra.mxu0 0.0
  %1203 = vmatpush.msra.mxu0 0.0
  %1204 = vmatpush.msra.mxu0 0.0
  %1205 = vmatpush.msra.mxu0 0.0
  %1206 = vmatpush.msra.mxu0 0.0
  %1207 = vmatpush.msra.mxu0 0.0
  %1208 = vmatpush.msra.mxu0 0.0
  %1209 = vmatpush.msra.mxu0 0.0
  %1210 = vmatpush.msra.mxu0 %v929
  %1211 = vmatmul.f32.gmra.mxu0 %v1193
  %v1212 = vpop.f32.mrf.mxu0
  %v1213 = vadd.f32 0.0, %v1212
  %1214 = vdwg.mxu0
  %1215 = vmatpush.msra.mxu0 0.0
  %1216 = vmatpush.msra.mxu0 0.0
  %1217 = vmatpush.msra.mxu0 0.0
  %1218 = vmatpush.msra.mxu0 0.0
  %1219 = vmatpush.msra.mxu0 0.0
  %1220 = vmatpush.msra.mxu0 0.0
  %1221 = vmatpush.msra.mxu0 0.0
  %1222 = vmatpush.msra.mxu0 0.0
  %1223 = vmatpush.msra.mxu0 0.0
  %1224 = vmatpush.msra.mxu0 0.0
  %1225 = vmatpush.msra.mxu0 0.0
  %1226 = vmatpush.msra.mxu0 0.0
  %1227 = vmatpush.msra.mxu0 0.0
  %1228 = vmatpush.msra.mxu0 0.0
  %1229 = vmatpush.msra.mxu0 0.0
  %1230 = vmatpush.msra.mxu0 %v930
  %1231 = vmatmul.f32.gmra.mxu0 %v1193
  %v1232 = vpop.f32.mrf.mxu0
  %v1233 = vadd.f32 0.0, %v1232
  %1234 = vdwg.mxu0
  %v1236 = vrot.slane %v1233, 4
  %v1238 = vsel %vm979, %v1213, %v1236
  %s1239 = scalar_lea.vmem %s9, 384
  %v1240 = vld [vmem:[%s1239] sm:$0xff]
  %v1241 = vld [vmem:[%s1239 + $0x8] sm:$0xff]
  %v1242 = vld [vmem:[%s1239 + $0x10] sm:$0xff]
  %v1243 = vld [vmem:[%s1239 + $0x18] sm:$0xff]
  %v1244 = vld [vmem:[%s1239 + $0x20] sm:$0xff]
  %v1245 = vld [vmem:[%s1239 + $0x28] sm:$0xff]
  %v1246 = vld [vmem:[%s1239 + $0x30] sm:$0xff]
  %v1247 = vld [vmem:[%s1239 + $0x38] sm:$0xff]
  %v1248 = vld [vmem:[%s1239 + $0x40] sm:$0xff]
  %v1249 = vld [vmem:[%s1239 + $0x48] sm:$0xff]
  %v1250 = vld [vmem:[%s1239 + $0x50] sm:$0xff]
  %v1251 = vld [vmem:[%s1239 + $0x58] sm:$0xff]
  %v1252 = vld [vmem:[%s1239 + $0x60] sm:$0xff]
  %v1253 = vld [vmem:[%s1239 + $0x68] sm:$0xff]
  %v1254 = vld [vmem:[%s1239 + $0x70] sm:$0xff]
  %v1255 = vld [vmem:[%s1239 + $0x78] sm:$0xff]
  %1256 = vmatpush.msra.mxu0 %v1255
  %1257 = vmatpush.msra.mxu0 %v1254
  %1258 = vmatpush.msra.mxu0 %v1253
  %1259 = vmatpush.msra.mxu0 %v1252
  %1260 = vmatpush.msra.mxu0 %v1251
  %1261 = vmatpush.msra.mxu0 %v1250
  %1262 = vmatpush.msra.mxu0 %v1249
  %1263 = vmatpush.msra.mxu0 %v1248
  %1264 = vmatpush.msra.mxu0 %v1247
  %1265 = vmatpush.msra.mxu0 %v1246
  %1266 = vmatpush.msra.mxu0 %v1245
  %1267 = vmatpush.msra.mxu0 %v1244
  %1268 = vmatpush.msra.mxu0 %v1243
  %1269 = vmatpush.msra.mxu0 %v1242
  %1270 = vmatpush.msra.mxu0 %v1241
  %1271 = vmatpush.msra.mxu0 %v1240
  %1272 = vmatmul.f32.gmra.mxu0 %v1238
  %v1273 = vpop.f32.mrf.mxu0
  %v1274 = vadd.f32 0.0, %v1273
  %1275 = vdwg.mxu0
  %v1276 = vadd.f32 %v1189, %v1274
  %v1277 = vld [vmem:[%s10] sm:$0x1]
  %v1278 = vld [vmem:[%s11] sm:$0x1]
  %v1279 = vld [vmem:[%s12] sm:$0xff]
  %v1280 = vld [vmem:[%s12 + $0x8] sm:$0xff]
  %v1281 = vld [vmem:[%s12 + $0x10] sm:$0xff]
  %v1282 = vld [vmem:[%s12 + $0x18] sm:$0xff]
  %v1283 = vld [vmem:[%s12 + $0x20] sm:$0xff]
  %v1284 = vld [vmem:[%s12 + $0x28] sm:$0xff]
  %v1285 = vld [vmem:[%s12 + $0x30] sm:$0xff]
  %v1286 = vld [vmem:[%s12 + $0x38] sm:$0xff]
  %v1287 = vld [vmem:[%s12 + $0x40] sm:$0xff]
  %v1288 = vld [vmem:[%s12 + $0x48] sm:$0xff]
  %v1289 = vld [vmem:[%s12 + $0x50] sm:$0xff]
  %v1290 = vld [vmem:[%s12 + $0x58] sm:$0xff]
  %v1291 = vld [vmem:[%s12 + $0x60] sm:$0xff]
  %v1292 = vld [vmem:[%s12 + $0x68] sm:$0xff]
  %v1293 = vld [vmem:[%s12 + $0x70] sm:$0xff]
  %v1294 = vld [vmem:[%s12 + $0x78] sm:$0xff]
  %v1295 = vrot.slane %v1276, 4
  %v1296 = vadd.f32 %v1276, %v1295
  %v1297 = vrot.slane %v1296, 2
  %v1298 = vadd.f32 %v1296, %v1297
  %v1299 = vrot.slane %v1298, 1
  %v1300 = vadd.f32 %v1298, %v1299
  %v1301 = vmul.f32 %v1276, %v1276
  %v1302 = vrot.slane %v1301, 4
  %v1303 = vadd.f32 %v1301, %v1302
  %v1304 = vrot.slane %v1303, 2
  %v1305 = vadd.f32 %v1303, %v1304
  %v1306 = vrot.slane %v1305, 1
  %v1307 = vadd.f32 %v1305, %v1306
  %1308 = vmatpush.msra.mxu0 %v1294
  %1309 = vmatpush.msra.mxu0 %v1293
  %1310 = vmatpush.msra.mxu0 %v1292
  %1311 = vmatpush.msra.mxu0 %v1291
  %1312 = vmatpush.msra.mxu0 %v1290
  %1313 = vmatpush.msra.mxu0 %v1289
  %1314 = vmatpush.msra.mxu0 %v1288
  %1315 = vmatpush.msra.mxu0 %v1287
  %1316 = vmatpush.msra.mxu0 %v1286
  %1317 = vmatpush.msra.mxu0 %v1285
  %1318 = vmatpush.msra.mxu0 %v1284
  %1319 = vmatpush.msra.mxu0 %v1283
  %1320 = vmatpush.msra.mxu0 %v1282
  %1321 = vmatpush.msra.mxu0 %v1281
  %1322 = vmatpush.msra.mxu0 %v1280
  %1323 = vmatpush.msra.mxu0 %v1279
  %1324 = vmatmul.f32.gmra.mxu0 %v1300
  %v1325 = vpop.f32.mrf.mxu0
  %v1326 = vadd.f32 0.0, %v1325
  %1327 = vdwg.mxu0
  %v1328 = vmul.f32 %v1326, 0.03125
  %1329 = vmatpush.msra.mxu0 %v1294
  %1330 = vmatpush.msra.mxu0 %v1293
  %1331 = vmatpush.msra.mxu0 %v1292
  %1332 = vmatpush.msra.mxu0 %v1291
  %1333 = vmatpush.msra.mxu0 %v1290
  %1334 = vmatpush.msra.mxu0 %v1289
  %1335 = vmatpush.msra.mxu0 %v1288
  %1336 = vmatpush.msra.mxu0 %v1287
  %1337 = vmatpush.msra.mxu0 %v1286
  %1338 = vmatpush.msra.mxu0 %v1285
  %1339 = vmatpush.msra.mxu0 %v1284
  %1340 = vmatpush.msra.mxu0 %v1283
  %1341 = vmatpush.msra.mxu0 %v1282
  %1342 = vmatpush.msra.mxu0 %v1281
  %1343 = vmatpush.msra.mxu0 %v1280
  %1344 = vmatpush.msra.mxu0 %v1279
  %1345 = vmatmul.f32.gmra.mxu0 %v1307
  %v1346 = vpop.f32.mrf.mxu0
  %v1347 = vadd.f32 0.0, %v1346
  %1348 = vdwg.mxu0
  %v1349 = vmul.f32 %v1347, 0.03125
  %v1350 = vmul.f32 %v1328, %v1328
  %v1351 = vsub.f32 %v1349, %v1350
  %v1352 = vadd.f32 %v1351, 1e-05
  %v1353 = vrsqrt.pop %v1352
  %v1354 = vmul.f32 %v1353, %v1352
  %v1355 = vmul.f32 %v1354, %v1353
  %v1356 = vmul.f32 0.5, %v1355
  %v1357 = vsub.f32 1.5, %v1356
  %v1358 = vmul.f32 %v1353, %v1357
  %vm1359 = vweird.f32 %v1352
  %vm1360 = vweird.f32 %v1353
  %vm1361 = vmor %vm1359, %vm1360
  %v1362 = vsel %vm1361, %v1353, %v1358
  %v1363 = vmul.f32 %v1362, %v1277
  %v1364 = vperm.slane %v1328, 0
  %v1365 = vsub.f32 %v1276, %v1364
  %v1366 = vperm.slane %v1363, 0
  %v1367 = vmul.f32 %v1365, %v1366
  %v1369 = vperm.slane %v1278, 0
  %v1371 = vadd.f32 %v1367, %v1369
  %vm1372 = vcmp.ge.f32.partialorder %v1371, 0.0
  %v1373 = vmul.f32 %v1371, 0.2
  %v1374 = vsel %vm1372, %v1371, %v1373
  %v1375 = vld [vmem:[%s13] sm:$0x1]
  %vm1376 = vcmask 31744
  %v1378 = vsel %vm1376, %v1375, 0
  %v1381 = vsel %vm979, %v1374, 0
  %1383 = vmatpush.msra.mxu0 0.0
  %1384 = vmatpush.msra.mxu0 0.0
  %1385 = vmatpush.msra.mxu0 0.0
  %1386 = vmatpush.msra.mxu0 0.0
  %1387 = vmatpush.msra.mxu0 0.0
  %1388 = vmatpush.msra.mxu0 0.0
  %1389 = vmatpush.msra.mxu0 0.0
  %1390 = vmatpush.msra.mxu0 0.0
  %1391 = vmatpush.msra.mxu0 0.0
  %1392 = vmatpush.msra.mxu0 0.0
  %1393 = vmatpush.msra.mxu0 0.0
  %1394 = vmatpush.msra.mxu0 0.0
  %1395 = vmatpush.msra.mxu0 0.0
  %1396 = vmatpush.msra.mxu0 0.0
  %1397 = vmatpush.msra.mxu0 0.0
  %1398 = vmatpush.msra.mxu0 %v1381
  %1399 = vmatmul.f32.gmra.mxu0 %v1378
  %v1400 = vpop.f32.mrf.mxu0
  %v1401 = vadd.f32 0.0, %v1400
  %1402 = vdwg.mxu0
  %v1403 = vrot.slane %v1374, 4
  %v1404 = vsel %vm979, %v1403, 0
  %1406 = vmatpush.msra.mxu0 0.0
  %1407 = vmatpush.msra.mxu0 0.0
  %1408 = vmatpush.msra.mxu0 0.0
  %1409 = vmatpush.msra.mxu0 0.0
  %1410 = vmatpush.msra.mxu0 0.0
  %1411 = vmatpush.msra.mxu0 0.0
  %1412 = vmatpush.msra.mxu0 0.0
  %1413 = vmatpush.msra.mxu0 0.0
  %1414 = vmatpush.msra.mxu0 0.0
  %1415 = vmatpush.msra.mxu0 0.0
  %1416 = vmatpush.msra.mxu0 0.0
  %1417 = vmatpush.msra.mxu0 0.0
  %1418 = vmatpush.msra.mxu0 0.0
  %1419 = vmatpush.msra.mxu0 0.0
  %1420 = vmatpush.msra.mxu0 0.0
  %1421 = vmatpush.msra.mxu0 %v1404
  %1422 = vmatmul.f32.gmra.mxu0 %v1378
  %v1423 = vpop.f32.mrf.mxu0
  %v1424 = vadd.f32 0.0, %v1423
  %1425 = vdwg.mxu0
  %v1427 = vrot.slane %v1424, 7
  %vm1429 = vcmask 1040384
  %v1430 = vsel %vm1429, %v1401, %v1427
  %v1431 = vld [vmem:[%s14] sm:$0xff]
  %v1432 = vld [vmem:[%s14 + $0x8] sm:$0xff]
  %v1433 = vld [vmem:[%s14 + $0x10] sm:$0xff]
  %v1434 = vld [vmem:[%s14 + $0x18] sm:$0xff]
  %v1435 = vld [vmem:[%s14 + $0x20] sm:$0xff]
  %v1436 = vld [vmem:[%s14 + $0x28] sm:$0xff]
  %v1437 = vld [vmem:[%s14 + $0x30] sm:$0xff]
  %v1438 = vld [vmem:[%s14 + $0x38] sm:$0xff]
  %v1439 = vld [vmem:[%s14 + $0x40] sm:$0xff]
  %v1440 = vld [vmem:[%s14 + $0x48] sm:$0xff]
  %v1441 = vld [vmem:[%s14 + $0x50] sm:$0xff]
  %v1442 = vld [vmem:[%s14 + $0x58] sm:$0xff]
  %v1443 = vld [vmem:[%s14 + $0x60] sm:$0xff]
  %v1444 = vld [vmem:[%s14 + $0x68] sm:$0xff]
  %v1445 = vld [vmem:[%s14 + $0x70] sm:$0xff]
  %v1446 = vld [vmem:[%s14 + $0x78] sm:$0xff]
  %s1447 = scalar_lea.vmem %s13, 1
  %v1448 = vld [vmem:[%s1447] sm:$0x1]
  %v1450 = vsel %vm1376, %v1448, 0
  %1452 = vmatpush.msra.mxu0 0.0
  %1453 = vmatpush.msra.mxu0 0.0
  %1454 = vmatpush.msra.mxu0 0.0
  %1455 = vmatpush.msra.mxu0 0.0
  %1456 = vmatpush.msra.mxu0 0.0
  %1457 = vmatpush.msra.mxu0 0.0
  %1458 = vmatpush.msra.mxu0 0.0
  %1459 = vmatpush.msra.mxu0 0.0
  %1460 = vmatpush.msra.mxu0 0.0
  %1461 = vmatpush.msra.mxu0 0.0
  %1462 = vmatpush.msra.mxu0 0.0
  %1463 = vmatpush.msra.mxu0 0.0
  %1464 = vmatpush.msra.mxu0 0.0
  %1465 = vmatpush.msra.mxu0 0.0
  %1466 = vmatpush.msra.mxu0 0.0
  %1467 = vmatpush.msra.mxu0 %v1381
  %1468 = vmatmul.f32.gmra.mxu0 %v1450
  %v1469 = vpop.f32.mrf.mxu0
  %v1470 = vadd.f32 0.0, %v1469
  %1471 = vdwg.mxu0
  %1472 = vmatpush.msra.mxu0 0.0
  %1473 = vmatpush.msra.mxu0 0.0
  %1474 = vmatpush.msra.mxu0 0.0
  %1475 = vmatpush.msra.mxu0 0.0
  %1476 = vmatpush.msra.mxu0 0.0
  %1477 = vmatpush.msra.mxu0 0.0
  %1478 = vmatpush.msra.mxu0 0.0
  %1479 = vmatpush.msra.mxu0 0.0
  %1480 = vmatpush.msra.mxu0 0.0
  %1481 = vmatpush.msra.mxu0 0.0
  %1482 = vmatpush.msra.mxu0 0.0
  %1483 = vmatpush.msra.mxu0 0.0
  %1484 = vmatpush.msra.mxu0 0.0
  %1485 = vmatpush.msra.mxu0 0.0
  %1486 = vmatpush.msra.mxu0 0.0
  %1487 = vmatpush.msra.mxu0 %v1404
  %1488 = vmatmul.f32.gmra.mxu0 %v1450
  %v1489 = vpop.f32.mrf.mxu0
  %v1490 = vadd.f32 0.0, %v1489
  %1491 = vdwg.mxu0
  %v1493 = vrot.slane %v1490, 7
  %v1495 = vsel %vm1429, %v1470, %v1493
  %s1496 = scalar_lea.vmem %s14, 128
  %v1497 = vld [vmem:[%s1496] sm:$0xff]
  %v1498 = vld [vmem:[%s1496 + $0x8] sm:$0xff]
  %v1499 = vld [vmem:[%s1496 + $0x10] sm:$0xff]
  %v1500 = vld [vmem:[%s1496 + $0x18] sm:$0xff]
  %v1501 = vld [vmem:[%s1496 + $0x20] sm:$0xff]
  %v1502 = vld [vmem:[%s1496 + $0x28] sm:$0xff]
  %v1503 = vld [vmem:[%s1496 + $0x30] sm:$0xff]
  %v1504 = vld [vmem:[%s1496 + $0x38] sm:$0xff]
  %v1505 = vld [vmem:[%s1496 + $0x40] sm:$0xff]
  %v1506 = vld [vmem:[%s1496 + $0x48] sm:$0xff]
  %v1507 = vld [vmem:[%s1496 + $0x50] sm:$0xff]
  %v1508 = vld [vmem:[%s1496 + $0x58] sm:$0xff]
  %v1509 = vld [vmem:[%s1496 + $0x60] sm:$0xff]
  %v1510 = vld [vmem:[%s1496 + $0x68] sm:$0xff]
  %v1511 = vld [vmem:[%s1496 + $0x70] sm:$0xff]
  %v1512 = vld [vmem:[%s1496 + $0x78] sm:$0xff]
  %1513 = vmatpush.msra.mxu0 %v1512
  %1514 = vmatpush.msra.mxu0 %v1511
  %1515 = vmatpush.msra.mxu0 %v1510
  %1516 = vmatpush.msra.mxu0 %v1509
  %1517 = vmatpush.msra.mxu0 %v1508
  %1518 = vmatpush.msra.mxu0 %v1507
  %1519 = vmatpush.msra.mxu0 %v1506
  %1520 = vmatpush.msra.mxu0 %v1505
  %1521 = vmatpush.msra.mxu0 %v1504
  %1522 = vmatpush.msra.mxu0 %v1503
  %1523 = vmatpush.msra.mxu0 %v1502
  %1524 = vmatpush.msra.mxu0 %v1501
  %1525 = vmatpush.msra.mxu0 %v1500
  %1526 = vmatpush.msra.mxu0 %v1499
  %1527 = vmatpush.msra.mxu0 %v1498
  %1528 = vmatpush.msra.mxu0 %v1497
  %1529 = vmatmul.f32.gmra.mxu0 %v1495
  %v1530 = vpop.f32.mrf.mxu0
  %v1531 = vadd.f32 0.0, %v1530
  %1532 = vdwg.mxu0
  %1533 = vmatpush.msra.mxu0 %v1446
  %1534 = vmatpush.msra.mxu0 %v1445
  %1535 = vmatpush.msra.mxu0 %v1444
  %1536 = vmatpush.msra.mxu0 %v1443
  %1537 = vmatpush.msra.mxu0 %v1442
  %1538 = vmatpush.msra.mxu0 %v1441
  %1539 = vmatpush.msra.mxu0 %v1440
  %1540 = vmatpush.msra.mxu0 %v1439
  %1541 = vmatpush.msra.mxu0 %v1438
  %1542 = vmatpush.msra.mxu0 %v1437
  %1543 = vmatpush.msra.mxu0 %v1436
  %1544 = vmatpush.msra.mxu0 %v1435
  %1545 = vmatpush.msra.mxu0 %v1434
  %1546 = vmatpush.msra.mxu0 %v1433
  %1547 = vmatpush.msra.mxu0 %v1432
  %1548 = vmatpush.msra.mxu0 %v1431
  %1549 = vmatmul.f32.gmra.mxu0 %v1430
  %v1550 = vpop.f32.mrf.mxu0
  %v1551 = vadd.f32 %v1531, %v1550
  %1552 = vdwg.mxu0
  %s1553 = scalar_lea.vmem %s13, 2
  %v1554 = vld [vmem:[%s1553] sm:$0x1]
  %v1556 = vsel %vm1376, %v1554, 0
  %1558 = vmatpush.msra.mxu0 0.0
  %1559 = vmatpush.msra.mxu0 0.0
  %1560 = vmatpush.msra.mxu0 0.0
  %1561 = vmatpush.msra.mxu0 0.0
  %1562 = vmatpush.msra.mxu0 0.0
  %1563 = vmatpush.msra.mxu0 0.0
  %1564 = vmatpush.msra.mxu0 0.0
  %1565 = vmatpush.msra.mxu0 0.0
  %1566 = vmatpush.msra.mxu0 0.0
  %1567 = vmatpush.msra.mxu0 0.0
  %1568 = vmatpush.msra.mxu0 0.0
  %1569 = vmatpush.msra.mxu0 0.0
  %1570 = vmatpush.msra.mxu0 0.0
  %1571 = vmatpush.msra.mxu0 0.0
  %1572 = vmatpush.msra.mxu0 0.0
  %1573 = vmatpush.msra.mxu0 %v1381
  %1574 = vmatmul.f32.gmra.mxu0 %v1556
  %v1575 = vpop.f32.mrf.mxu0
  %v1576 = vadd.f32 0.0, %v1575
  %1577 = vdwg.mxu0
  %1578 = vmatpush.msra.mxu0 0.0
  %1579 = vmatpush.msra.mxu0 0.0
  %1580 = vmatpush.msra.mxu0 0.0
  %1581 = vmatpush.msra.mxu0 0.0
  %1582 = vmatpush.msra.mxu0 0.0
  %1583 = vmatpush.msra.mxu0 0.0
  %1584 = vmatpush.msra.mxu0 0.0
  %1585 = vmatpush.msra.mxu0 0.0
  %1586 = vmatpush.msra.mxu0 0.0
  %1587 = vmatpush.msra.mxu0 0.0
  %1588 = vmatpush.msra.mxu0 0.0
  %1589 = vmatpush.msra.mxu0 0.0
  %1590 = vmatpush.msra.mxu0 0.0
  %1591 = vmatpush.msra.mxu0 0.0
  %1592 = vmatpush.msra.mxu0 0.0
  %1593 = vmatpush.msra.mxu0 %v1404
  %1594 = vmatmul.f32.gmra.mxu0 %v1556
  %v1595 = vpop.f32.mrf.mxu0
  %v1596 = vadd.f32 0.0, %v1595
  %1597 = vdwg.mxu0
  %v1599 = vrot.slane %v1596, 7
  %v1601 = vsel %vm1429, %v1576, %v1599
  %s1602 = scalar_lea.vmem %s14, 256
  %v1603 = vld [vmem:[%s1602] sm:$0xff]
  %v1604 = vld [vmem:[%s1602 + $0x8] sm:$0xff]
  %v1605 = vld [vmem:[%s1602 + $0x10] sm:$0xff]
  %v1606 = vld [vmem:[%s1602 + $0x18] sm:$0xff]
  %v1607 = vld [vmem:[%s1602 + $0x20] sm:$0xff]
  %v1608 = vld [vmem:[%s1602 + $0x28] sm:$0xff]
  %v1609 = vld [vmem:[%s1602 + $0x30] sm:$0xff]
  %v1610 = vld [vmem:[%s1602 + $0x38] sm:$0xff]
  %v1611 = vld [vmem:[%s1602 + $0x40] sm:$0xff]
  %v1612 = vld [vmem:[%s1602 + $0x48] sm:$0xff]
  %v1613 = vld [vmem:[%s1602 + $0x50] sm:$0xff]
  %v1614 = vld [vmem:[%s1602 + $0x58] sm:$0xff]
  %v1615 = vld [vmem:[%s1602 + $0x60] sm:$0xff]
  %v1616 = vld [vmem:[%s1602 + $0x68] sm:$0xff]
  %v1617 = vld [vmem:[%s1602 + $0x70] sm:$0xff]
  %v1618 = vld [vmem:[%s1602 + $0x78] sm:$0xff]
  %1619 = vmatpush.msra.mxu0 %v1618
  %1620 = vmatpush.msra.mxu0 %v1617
  %1621 = vmatpush.msra.mxu0 %v1616
  %1622 = vmatpush.msra.mxu0 %v1615
  %1623 = vmatpush.msra.mxu0 %v1614
  %1624 = vmatpush.msra.mxu0 %v1613
  %1625 = vmatpush.msra.mxu0 %v1612
  %1626 = vmatpush.msra.mxu0 %v1611
  %1627 = vmatpush.msra.mxu0 %v1610
  %1628 = vmatpush.msra.mxu0 %v1609
  %1629 = vmatpush.msra.mxu0 %v1608
  %1630 = vmatpush.msra.mxu0 %v1607
  %1631 = vmatpush.msra.mxu0 %v1606
  %1632 = vmatpush.msra.mxu0 %v1605
  %1633 = vmatpush.msra.mxu0 %v1604
  %1634 = vmatpush.msra.mxu0 %v1603
  %1635 = vmatmul.f32.gmra.mxu0 %v1601
  %v1636 = vpop.f32.mrf.mxu0
  %v1637 = vadd.f32 0.0, %v1636
  %1638 = vdwg.mxu0
  %v1639 = vadd.f32 %v1551, %v1637
  %s1640 = scalar_lea.vmem %s13, 3
  %v1641 = vld [vmem:[%s1640] sm:$0x1]
  %v1643 = vsel %vm1376, %v1641, 0
  %1645 = vmatpush.msra.mxu0 0.0
  %1646 = vmatpush.msra.mxu0 0.0
  %1647 = vmatpush.msra.mxu0 0.0
  %1648 = vmatpush.msra.mxu0 0.0
  %1649 = vmatpush.msra.mxu0 0.0
  %1650 = vmatpush.msra.mxu0 0.0
  %1651 = vmatpush.msra.mxu0 0.0
  %1652 = vmatpush.msra.mxu0 0.0
  %1653 = vmatpush.msra.mxu0 0.0
  %1654 = vmatpush.msra.mxu0 0.0
  %1655 = vmatpush.msra.mxu0 0.0
  %1656 = vmatpush.msra.mxu0 0.0
  %1657 = vmatpush.msra.mxu0 0.0
  %1658 = vmatpush.msra.mxu0 0.0
  %1659 = vmatpush.msra.mxu0 0.0
  %1660 = vmatpush.msra.mxu0 %v1381
  %1661 = vmatmul.f32.gmra.mxu0 %v1643
  %v1662 = vpop.f32.mrf.mxu0
  %v1663 = vadd.f32 0.0, %v1662
  %1664 = vdwg.mxu0
  %1665 = vmatpush.msra.mxu0 0.0
  %1666 = vmatpush.msra.mxu0 0.0
  %1667 = vmatpush.msra.mxu0 0.0
  %1668 = vmatpush.msra.mxu0 0.0
  %1669 = vmatpush.msra.mxu0 0.0
  %1670 = vmatpush.msra.mxu0 0.0
  %1671 = vmatpush.msra.mxu0 0.0
  %1672 = vmatpush.msra.mxu0 0.0
  %1673 = vmatpush.msra.mxu0 0.0
  %1674 = vmatpush.msra.mxu0 0.0
  %1675 = vmatpush.msra.mxu0 0.0
  %1676 = vmatpush.msra.mxu0 0.0
  %1677 = vmatpush.msra.mxu0 0.0
  %1678 = vmatpush.msra.mxu0 0.0
  %1679 = vmatpush.msra.mxu0 0.0
  %1680 = vmatpush.msra.mxu0 %v1404
  %1681 = vmatmul.f32.gmra.mxu0 %v1643
  %v1682 = vpop.f32.mrf.mxu0
  %v1683 = vadd.f32 0.0, %v1682
  %1684 = vdwg.mxu0
  %v1686 = vrot.slane %v1683, 7
  %v1688 = vsel %vm1429, %v1663, %v1686
  %s1689 = scalar_lea.vmem %s14, 384
  %v1690 = vld [vmem:[%s1689] sm:$0xff]
  %v1691 = vld [vmem:[%s1689 + $0x8] sm:$0xff]
  %v1692 = vld [vmem:[%s1689 + $0x10] sm:$0xff]
  %v1693 = vld [vmem:[%s1689 + $0x18] sm:$0xff]
  %v1694 = vld [vmem:[%s1689 + $0x20] sm:$0xff]
  %v1695 = vld [vmem:[%s1689 + $0x28] sm:$0xff]
  %v1696 = vld [vmem:[%s1689 + $0x30] sm:$0xff]
  %v1697 = vld [vmem:[%s1689 + $0x38] sm:$0xff]
  %v1698 = vld [vmem:[%s1689 + $0x40] sm:$0xff]
  %v1699 = vld [vmem:[%s1689 + $0x48] sm:$0xff]
  %v1700 = vld [vmem:[%s1689 + $0x50] sm:$0xff]
  %v1701 = vld [vmem:[%s1689 + $0x58] sm:$0xff]
  %v1702 = vld [vmem:[%s1689 + $0x60] sm:$0xff]
  %v1703 = vld [vmem:[%s1689 + $0x68] sm:$0xff]
  %v1704 = vld [vmem:[%s1689 + $0x70] sm:$0xff]
  %v1705 = vld [vmem:[%s1689 + $0x78] sm:$0xff]
  %1706 = vmatpush.msra.mxu0 %v1705
  %1707 = vmatpush.msra.mxu0 %v1704
  %1708 = vmatpush.msra.mxu0 %v1703
  %1709 = vmatpush.msra.mxu0 %v1702
  %1710 = vmatpush.msra.mxu0 %v1701
  %1711 = vmatpush.msra.mxu0 %v1700
  %1712 = vmatpush.msra.mxu0 %v1699
  %1713 = vmatpush.msra.mxu0 %v1698
  %1714 = vmatpush.msra.mxu0 %v1697
  %1715 = vmatpush.msra.mxu0 %v1696
  %1716 = vmatpush.msra.mxu0 %v1695
  %1717 = vmatpush.msra.mxu0 %v1694
  %1718 = vmatpush.msra.mxu0 %v1693
  %1719 = vmatpush.msra.mxu0 %v1692
  %1720 = vmatpush.msra.mxu0 %v1691
  %1721 = vmatpush.msra.mxu0 %v1690
  %1722 = vmatmul.f32.gmra.mxu0 %v1688
  %v1723 = vpop.f32.mrf.mxu0
  %v1724 = vadd.f32 0.0, %v1723
  %1725 = vdwg.mxu0
  %v1726 = vadd.f32 %v1639, %v1724
  %v1727 = vsub.f32 0.0, %v1726
  %v1728 = vmul.f32 %v1727, 1.442695
  %v1729 = vpow.pop %v1728
  %v1730 = vadd.f32 %v1729, 1.0
  %v1731 = vrcp.pop %v1730
  %v1732 = vmul.f32 %v1730, %v1731
  %v1733 = vsub.f32 1.0, %v1732
  %v1734 = vmul.f32 %v1731, %v1733
  %v1735 = vadd.f32 %v1731, %v1734
  %vm1736 = vweird.f32 %v1730
  %vm1737 = vweird.f32 %v1731
  %vm1738 = vmor %vm1736, %vm1737
  %v1739 = vsel %vm1738, %v1731, %v1735
  %v1740 = vand.u32 2147483647, %v1730
  %vm1741 = vcmp.eq.f32.partialorder %v1740, 8.507059e+37
  %v1742 = vand.u32 %v1730, 2147483648
  %v1743 = vor.u32 1.1754944e-38, %v1742
  %v1744 = vsel %vm1741, %v1743, %v1739
  %v1745 = vmul.f32 1.0, %v1744
  %vm1746 = vcmask 1024
  %1747 = vst.msk [vmem:[%s15] sm:$0x3] %vm1746, %v1745
  // Predicated region
  $region62: #{discriminator_forward.1} parent=0 // pred_check
    _
  $region63: #{discriminator_forward.1} parent=0 // pred_check_branch
    %1749 = sbr.rel (0) target = $region65
  $region64: #{discriminator_forward.1} parent=0 // pred_region
    _
  $region65: #{discriminator_forward.1} parent=0 // pred_fallthru
    _
  // Predicated region
  $region66: #{discriminator_forward.1} parent=0 // pred_check
    _
  $region67: #{discriminator_forward.1} parent=0 // pred_check_branch
    %1751 = sbr.rel (0) target = $region69
  $region68: #{discriminator_forward.1} parent=0 // pred_region
    _
  $region69: #{discriminator_forward.1} parent=0 // pred_fallthru
    _

</llo_original>
